<compile_context>
chip_gen: v7x
topology: tpu7x:2x2x1
jax: 0.10.0
libtpu: 0.0.40
codegen_flags: <defaults>
</compile_context>

<pallas_src>
import functools

import jax
import jax.numpy as jnp
from jax.experimental import pallas as pl
from jax.experimental.pallas import tpu as pltpu

_BN_EPS = 0.8                       # nn.BatchNorm2d(out_filters, 0.8): 0.8 is eps (intentional)
_BN_FLAGS = (False, True, True, True)
_VMEM = pl.BlockSpec(memory_space=pltpu.MemorySpace.VMEM)


# ------------------------------ kernel bodies ------------------------------

def _conv_lrelu(p_ref, w_ref, b_ref):
    """bf16 MXU matmul with f32 accumulate; bias + LeakyReLU(0.2) in f32."""
    x = jnp.dot(p_ref[...], w_ref[...], preferred_element_type=jnp.float32)
    x = x + b_ref[...]
    # LeakyReLU(0.2) as a single max; Dropout2d(0.25) = identity (eval semantics).
    return jnp.maximum(x, 0.2 * x)


def _bn(y, gb_ref, eps):
    """BatchNorm with batch statistics (train-mode forward), biased variance.

    Centered second moment (mean((y-mean)^2)) in f32 avoids the E[x^2]-E[x]^2
    cancellation flagged in review; stats are exact because the whole (M, C)
    block is resident in this single kernel invocation."""
    gb = gb_ref[...]
    mean = jnp.mean(y, axis=0, keepdims=True)
    d = y - mean
    var = jnp.mean(d * d, axis=0, keepdims=True)
    return d * jax.lax.rsqrt(var + eps) * gb[0:1, :] + gb[1:2, :]


def _conv_lrelu_kernel(p_ref, w_ref, b_ref, o_ref):
    o_ref[...] = _conv_lrelu(p_ref, w_ref, b_ref).astype(o_ref.dtype)


def _conv_lrelu_bn_kernel(p_ref, w_ref, b_ref, gb_ref, o_ref, *, eps):
    o_ref[...] = _bn(_conv_lrelu(p_ref, w_ref, b_ref), gb_ref, eps).astype(o_ref.dtype)


def _conv_lrelu_bn_adv_kernel(p_ref, w_ref, b_ref, gb_ref, wl_ref, bl_ref, o_ref, *, eps):
    """Final block fused with adv_layer (ds_size == 1): the (N, 128) activation
    never leaves VMEM.  Linear(128 -> 1) + Sigmoid as VPU multiply + lane reduce
    (no N_out=1 MXU matmul)."""
    y = _bn(_conv_lrelu(p_ref, w_ref, b_ref), gb_ref, eps)
    z = jnp.sum(y * wl_ref[...], axis=-1, keepdims=True) + bl_ref[...]
    o_ref[...] = jax.nn.sigmoid(z).astype(o_ref.dtype)


def _adv_kernel(x_ref, w_ref, b_ref, o_ref):
    """Standalone Linear(feat -> 1) + Sigmoid (ds_size > 1 fallback)."""
    z = jnp.sum(x_ref[...].astype(jnp.float32) * w_ref[...], axis=-1, keepdims=True)
    o_ref[...] = jax.nn.sigmoid(z + b_ref[...]).astype(o_ref.dtype)


# ----------------------------- wrappers / prep -----------------------------

def _im2col_bf16(x_nhwc, k=3, s=2, p=1):
    """Patches (M, C_in*k*k) in (C_in, kh, kw) column order, bf16 for the MXU."""
    n, h, w, c = x_nhwc.shape
    xp = jnp.pad(x_nhwc.astype(jnp.bfloat16), ((0, 0), (p, p), (p, p), (0, 0)))
    ho = (h + 2 * p - k) // s + 1
    wo = (w + 2 * p - k) // s + 1
    cols = [xp[:, i:i + s * ho:s, j:j + s * wo:s, :] for i in range(k) for j in range(k)]
    patches = jnp.stack(cols, axis=3)                    # (n, ho, wo, k*k, c)
    patches = jnp.transpose(patches, (0, 1, 2, 4, 3))    # (n, ho, wo, c, k*k)
    return patches.reshape(n * ho * wo, c * k * k), ho, wo


def prepare_params(params):
    """One-time weight preparation (hoisted out of the forward pass)."""
    blocks = []
    for blk in params["blocks"]:
        c_out = blk["w"].shape[0]
        blocks.append(dict(
            w_km=blk["w"].reshape(c_out, -1).T.astype(jnp.bfloat16),        # (C_in*9, C_out)
            b_row=blk["b"].reshape(1, c_out).astype(jnp.float32),
            gb=jnp.stack([blk["gamma"], blk["beta"]]).astype(jnp.float32),  # (2, C_out)
        ))
    lin_w = params["lin_w"]
    feat = lin_w.shape[1]
    c_last = params["blocks"][-1]["w"].shape[0]
    ds = int(round((feat // c_last) ** 0.5))
    # Fold PyTorch's NCHW flatten into a column permutation of the linear weight
    # so the NHWC-flat activation is consumed directly (identity when ds == 1).
    lin_w_nhwc = lin_w.reshape(1, c_last, ds, ds).transpose(0, 2, 3, 1).reshape(1, feat)
    return dict(blocks=blocks,
                lin_w=lin_w_nhwc.astype(jnp.float32),
                lin_b=params["lin_b"].reshape(1, 1).astype(jnp.float32))


def discriminator_forward(img_nchw, prep):
    n = img_nchw.shape[0]
    x = jnp.transpose(img_nchw, (0, 2, 3, 1)).astype(jnp.bfloat16)   # NCHW -> NHWC bf16
    n_blocks = len(prep["blocks"])

    for idx, (blk, use_bn) in enumerate(zip(prep["blocks"], _BN_FLAGS)):
        patches, ho, wo = _im2col_bf16(x)
        c_out = blk["w_km"].shape[1]
        last = idx == n_blocks - 1

        if last and use_bn and ho == 1 and wo == 1:
            # Fully fused final block: conv + LeakyReLU + BN + Linear + Sigmoid.
            return pl.pallas_call(
                functools.partial(_conv_lrelu_bn_adv_kernel, eps=_BN_EPS),
                out_shape=jax.ShapeDtypeStruct((n, 1), jnp.float32),
                in_specs=[_VMEM] * 6, out_specs=_VMEM,
            )(patches, blk["w_km"], blk["b_row"], blk["gb"],
              prep["lin_w"], prep["lin_b"])

        if use_bn:
            y = pl.pallas_call(
                functools.partial(_conv_lrelu_bn_kernel, eps=_BN_EPS),
                out_shape=jax.ShapeDtypeStruct((n * ho * wo, c_out), jnp.bfloat16),
                in_specs=[_VMEM] * 4, out_specs=_VMEM,
            )(patches, blk["w_km"], blk["b_row"], blk["gb"])
        else:
            y = pl.pallas_call(
                _conv_lrelu_kernel,
                out_shape=jax.ShapeDtypeStruct((n * ho * wo, c_out), jnp.bfloat16),
                in_specs=[_VMEM] * 3, out_specs=_VMEM,
            )(patches, blk["w_km"], blk["b_row"])
        x = y.reshape(n, ho, wo, c_out)

    # ds_size > 1 fallback: NHWC-flat activation (weight columns already permuted).
    flat = x.reshape(n, -1)
    return pl.pallas_call(
        _adv_kernel,
        out_shape=jax.ShapeDtypeStruct((n, 1), jnp.float32),
        in_specs=[_VMEM] * 3, out_specs=_VMEM,
    )(flat, prep["lin_w"], prep["lin_b"])


def init_params(key, channels, img_size):
    cfg = [(channels, 16), (16, 32), (32, 64), (64, 128)]
    blocks = []
    for cin, cout in cfg:
        key, k1, k2 = jax.random.split(key, 3)
        blocks.append(dict(
            w=jax.random.normal(k1, (cout, cin, 3, 3), jnp.float32) * 0.1,
            b=jax.random.normal(k2, (cout,), jnp.float32) * 0.1,
            gamma=jnp.ones((cout,), jnp.float32),
            beta=jnp.zeros((cout,), jnp.float32),
        ))
    ds = img_size // 2 ** 4
    feat = 128 * ds * ds
    key, k1, k2 = jax.random.split(key, 3)
    lin_w = jax.random.normal(k1, (1, feat), jnp.float32) * 0.1
    lin_b = jax.random.normal(k2, (1,), jnp.float32) * 0.1
    return dict(blocks=blocks, lin_w=lin_w, lin_b=lin_b)


if __name__ == "__main__":
    key = jax.random.PRNGKey(0)
    batch, channels, img_size = 2, 4, 16          # opt.channels=4, opt.img_size=16
    kp, kx = jax.random.split(key)
    params = init_params(kp, channels, img_size)
    prep = prepare_params(params)                 # one-time weight prep (hoisted)
    img = jax.random.normal(kx, (batch, channels, img_size, img_size), jnp.float32)

    fwd = jax.jit(discriminator_forward)
    validity = fwd(img, prep)
    jax.block_until_ready(validity)
    assert validity.shape == (batch, 1)
    assert bool(jnp.all((validity >= 0.0) & (validity <= 1.0)))
    print("KERNEL_OK")
</pallas_src>

<mosaic_0001>
module attributes {stable_mosaic.version = 11 : i64} {
  func.func @_conv_lrelu_kernel(%arg0: memref<128x36xbf16, #tpu.memory_space<vmem>>, %arg1: memref<36x16xbf16, #tpu.memory_space<vmem>>, %arg2: memref<1x16xf32, #tpu.memory_space<vmem>>, %arg3: memref<128x16xbf16, #tpu.memory_space<vmem>>) attributes {dimension_semantics = [], scalar_prefetch = 0 : i64, scratch_operands = 0 : i64, tpu.core_type = #tpu.core_type<tc>} {
    %c0 = arith.constant 0 : index
    %c0_0 = arith.constant 0 : index
    %0 = vector.load %arg0[%c0, %c0_0] : memref<128x36xbf16, #tpu.memory_space<vmem>>, vector<128x36xbf16>
    %c0_1 = arith.constant 0 : index
    %c0_2 = arith.constant 0 : index
    %1 = vector.load %arg1[%c0_1, %c0_2] : memref<36x16xbf16, #tpu.memory_space<vmem>>, vector<36x16xbf16>
    %cst = arith.constant dense<0.000000e+00> : vector<128x16xf32>
    %2 = tpu.matmul %0, %1, %cst {dimension_numbers = #tpu.dot_dimension_numbers<[1], [0], [0], [1], [0, 0, 1, 1], [], []>} : vector<128x36xbf16>, vector<36x16xbf16>, vector<128x16xf32> -> vector<128x16xf32>
    %c0_3 = arith.constant 0 : index
    %c0_4 = arith.constant 0 : index
    %3 = vector.load %arg2[%c0_3, %c0_4] : memref<1x16xf32, #tpu.memory_space<vmem>>, vector<1x16xf32>
    %4 = vector.broadcast %3 : vector<1x16xf32> to vector<128x16xf32>
    %5 = arith.addf %2, %4 : vector<128x16xf32>
    %cst_5 = arith.constant 2.000000e-01 : f32
    %6 = vector.broadcast %cst_5 : f32 to vector<128x16xf32>
    %7 = arith.mulf %6, %5 : vector<128x16xf32>
    %8 = arith.maximumf %5, %7 : vector<128x16xf32>
    %9 = arith.truncf %8 : vector<128x16xf32> to vector<128x16xbf16>
    %c0_6 = arith.constant 0 : index
    %c0_7 = arith.constant 0 : index
    %10 = vector.load %arg3[%c0_6, %c0_7] : memref<128x16xbf16, #tpu.memory_space<vmem>>, vector<128x16xbf16>
    tpu.vector_store %arg3[%c0_6, %c0_7], %9 {strides = array<i32>} : memref<128x16xbf16, #tpu.memory_space<vmem>>, vector<128x16xbf16>,
    return
  }
}

module attributes {stable_mosaic.version = 11 : i64} {
  func.func @_conv_lrelu_bn_kernel(%arg0: memref<32x144xbf16, #tpu.memory_space<vmem>>, %arg1: memref<144x32xbf16, #tpu.memory_space<vmem>>, %arg2: memref<1x32xf32, #tpu.memory_space<vmem>>, %arg3: memref<2x32xf32, #tpu.memory_space<vmem>>, %arg4: memref<32x32xbf16, #tpu.memory_space<vmem>>) attributes {dimension_semantics = [], scalar_prefetch = 0 : i64, scratch_operands = 0 : i64, tpu.core_type = #tpu.core_type<tc>} {
    %c0 = arith.constant 0 : index
    %c0_0 = arith.constant 0 : index
    %0 = vector.load %arg0[%c0, %c0_0] : memref<32x144xbf16, #tpu.memory_space<vmem>>, vector<32x144xbf16>
    %c0_1 = arith.constant 0 : index
    %c0_2 = arith.constant 0 : index
    %1 = vector.load %arg1[%c0_1, %c0_2] : memref<144x32xbf16, #tpu.memory_space<vmem>>, vector<144x32xbf16>
    %cst = arith.constant dense<0.000000e+00> : vector<32x32xf32>
    %2 = tpu.matmul %0, %1, %cst {dimension_numbers = #tpu.dot_dimension_numbers<[1], [0], [0], [1], [0, 0, 1, 1], [], []>} : vector<32x144xbf16>, vector<144x32xbf16>, vector<32x32xf32> -> vector<32x32xf32>
    %c0_3 = arith.constant 0 : index
    %c0_4 = arith.constant 0 : index
    %3 = vector.load %arg2[%c0_3, %c0_4] : memref<1x32xf32, #tpu.memory_space<vmem>>, vector<1x32xf32>
    %4 = vector.broadcast %3 : vector<1x32xf32> to vector<32x32xf32>
    %5 = arith.addf %2, %4 : vector<32x32xf32>
    %cst_5 = arith.constant 2.000000e-01 : f32
    %6 = vector.broadcast %cst_5 : f32 to vector<32x32xf32>
    %7 = arith.mulf %6, %5 : vector<32x32xf32>
    %8 = arith.maximumf %5, %7 : vector<32x32xf32>
    %c0_6 = arith.constant 0 : index
    %c0_7 = arith.constant 0 : index
    %9 = vector.load %arg3[%c0_6, %c0_7] : memref<2x32xf32, #tpu.memory_space<vmem>>, vector<2x32xf32>
    %cst_8 = arith.constant dense<0.000000e+00> : vector<32xf32>
    %10 = vector.multi_reduction <add>, %8, %cst_8 [0] : vector<32x32xf32> to vector<32xf32>
    %11 = vector.shape_cast %10 : vector<32xf32> to vector<1x32xf32>
    %cst_9 = arith.constant 3.200000e+01 : f32
    %12 = vector.broadcast %cst_9 : f32 to vector<1x32xf32>
    %13 = arith.divf %11, %12 : vector<1x32xf32>
    %14 = vector.broadcast %13 : vector<1x32xf32> to vector<32x32xf32>
    %15 = arith.subf %8, %14 : vector<32x32xf32>
    %16 = arith.mulf %15, %15 : vector<32x32xf32>
    %cst_10 = arith.constant dense<0.000000e+00> : vector<32xf32>
    %17 = vector.multi_reduction <add>, %16, %cst_10 [0] : vector<32x32xf32> to vector<32xf32>
    %18 = vector.shape_cast %17 : vector<32xf32> to vector<1x32xf32>
    %cst_11 = arith.constant 3.200000e+01 : f32
    %19 = vector.broadcast %cst_11 : f32 to vector<1x32xf32>
    %20 = arith.divf %18, %19 : vector<1x32xf32>
    %cst_12 = arith.constant 8.000000e-01 : f32
    %21 = vector.broadcast %cst_12 : f32 to vector<1x32xf32>
    %22 = arith.addf %20, %21 : vector<1x32xf32>
    %23 = math.rsqrt %22 : vector<1x32xf32>
    %24 = vector.broadcast %23 : vector<1x32xf32> to vector<32x32xf32>
    %25 = arith.mulf %15, %24 : vector<32x32xf32>
    %26 = vector.extract_strided_slice %9 {offsets = [0, 0], sizes = [1, 32], strides = [1, 1]} : vector<2x32xf32> to vector<1x32xf32>
    %27 = vector.broadcast %26 : vector<1x32xf32> to vector<32x32xf32>
    %28 = arith.mulf %25, %27 : vector<32x32xf32>
    %29 = vector.extract_strided_slice %9 {offsets = [1, 0], sizes = [1, 32], strides = [1, 1]} : vector<2x32xf32> to vector<1x32xf32>
    %30 = vector.broadcast %29 : vector<1x32xf32> to vector<32x32xf32>
    %31 = arith.addf %28, %30 : vector<32x32xf32>
    %32 = arith.truncf %31 : vector<32x32xf32> to vector<32x32xbf16>
    %c0_13 = arith.constant 0 : index
    %c0_14 = arith.constant 0 : index
    %33 = vector.load %arg4[%c0_13, %c0_14] : memref<32x32xbf16, #tpu.memory_space<vmem>>, vector<32x32xbf16>
    tpu.vector_store %arg4[%c0_13, %c0_14], %32 {strides = array<i32>} : memref<32x32xbf16, #tpu.memory_space<vmem>>, vector<32x32xbf16>,
    return
  }
}

module attributes {stable_mosaic.version = 11 : i64} {
  func.func @_conv_lrelu_bn_kernel(%arg0: memref<8x288xbf16, #tpu.memory_space<vmem>>, %arg1: memref<288x64xbf16, #tpu.memory_space<vmem>>, %arg2: memref<1x64xf32, #tpu.memory_space<vmem>>, %arg3: memref<2x64xf32, #tpu.memory_space<vmem>>, %arg4: memref<8x64xbf16, #tpu.memory_space<vmem>>) attributes {dimension_semantics = [], scalar_prefetch = 0 : i64, scratch_operands = 0 : i64, tpu.core_type = #tpu.core_type<tc>} {
    %c0 = arith.constant 0 : index
    %c0_0 = arith.constant 0 : index
    %0 = vector.load %arg0[%c0, %c0_0] : memref<8x288xbf16, #tpu.memory_space<vmem>>, vector<8x288xbf16>
    %c0_1 = arith.constant 0 : index
    %c0_2 = arith.constant 0 : index
    %1 = vector.load %arg1[%c0_1, %c0_2] : memref<288x64xbf16, #tpu.memory_space<vmem>>, vector<288x64xbf16>
    %cst = arith.constant dense<0.000000e+00> : vector<8x64xf32>
    %2 = tpu.matmul %0, %1, %cst {dimension_numbers = #tpu.dot_dimension_numbers<[1], [0], [0], [1], [0, 0, 1, 1], [], []>} : vector<8x288xbf16>, vector<288x64xbf16>, vector<8x64xf32> -> vector<8x64xf32>
    %c0_3 = arith.constant 0 : index
    %c0_4 = arith.constant 0 : index
    %3 = vector.load %arg2[%c0_3, %c0_4] : memref<1x64xf32, #tpu.memory_space<vmem>>, vector<1x64xf32>
    %4 = vector.broadcast %3 : vector<1x64xf32> to vector<8x64xf32>
    %5 = arith.addf %2, %4 : vector<8x64xf32>
    %cst_5 = arith.constant 2.000000e-01 : f32
    %6 = vector.broadcast %cst_5 : f32 to vector<8x64xf32>
    %7 = arith.mulf %6, %5 : vector<8x64xf32>
    %8 = arith.maximumf %5, %7 : vector<8x64xf32>
    %c0_6 = arith.constant 0 : index
    %c0_7 = arith.constant 0 : index
    %9 = vector.load %arg3[%c0_6, %c0_7] : memref<2x64xf32, #tpu.memory_space<vmem>>, vector<2x64xf32>
    %cst_8 = arith.constant dense<0.000000e+00> : vector<64xf32>
    %10 = vector.multi_reduction <add>, %8, %cst_8 [0] : vector<8x64xf32> to vector<64xf32>
    %11 = vector.shape_cast %10 : vector<64xf32> to vector<1x64xf32>
    %cst_9 = arith.constant 8.000000e+00 : f32
    %12 = vector.broadcast %cst_9 : f32 to vector<1x64xf32>
    %13 = arith.divf %11, %12 : vector<1x64xf32>
    %14 = vector.broadcast %13 : vector<1x64xf32> to vector<8x64xf32>
    %15 = arith.subf %8, %14 : vector<8x64xf32>
    %16 = arith.mulf %15, %15 : vector<8x64xf32>
    %cst_10 = arith.constant dense<0.000000e+00> : vector<64xf32>
    %17 = vector.multi_reduction <add>, %16, %cst_10 [0] : vector<8x64xf32> to vector<64xf32>
    %18 = vector.shape_cast %17 : vector<64xf32> to vector<1x64xf32>
    %cst_11 = arith.constant 8.000000e+00 : f32
    %19 = vector.broadcast %cst_11 : f32 to vector<1x64xf32>
    %20 = arith.divf %18, %19 : vector<1x64xf32>
    %cst_12 = arith.constant 8.000000e-01 : f32
    %21 = vector.broadcast %cst_12 : f32 to vector<1x64xf32>
    %22 = arith.addf %20, %21 : vector<1x64xf32>
    %23 = math.rsqrt %22 : vector<1x64xf32>
    %24 = vector.broadcast %23 : vector<1x64xf32> to vector<8x64xf32>
    %25 = arith.mulf %15, %24 : vector<8x64xf32>
    %26 = vector.extract_strided_slice %9 {offsets = [0, 0], sizes = [1, 64], strides = [1, 1]} : vector<2x64xf32> to vector<1x64xf32>
    %27 = vector.broadcast %26 : vector<1x64xf32> to vector<8x64xf32>
    %28 = arith.mulf %25, %27 : vector<8x64xf32>
    %29 = vector.extract_strided_slice %9 {offsets = [1, 0], sizes = [1, 64], strides = [1, 1]} : vector<2x64xf32> to vector<1x64xf32>
    %30 = vector.broadcast %29 : vector<1x64xf32> to vector<8x64xf32>
    %31 = arith.addf %28, %30 : vector<8x64xf32>
    %32 = arith.truncf %31 : vector<8x64xf32> to vector<8x64xbf16>
    %c0_13 = arith.constant 0 : index
    %c0_14 = arith.constant 0 : index
    %33 = vector.load %arg4[%c0_13, %c0_14] : memref<8x64xbf16, #tpu.memory_space<vmem>>, vector<8x64xbf16>
    tpu.vector_store %arg4[%c0_13, %c0_14], %32 {strides = array<i32>} : memref<8x64xbf16, #tpu.memory_space<vmem>>, vector<8x64xbf16>,
    return
  }
}

module attributes {stable_mosaic.version = 11 : i64} {
  func.func @_conv_lrelu_bn_adv_kernel(%arg0: memref<2x576xbf16, #tpu.memory_space<vmem>>, %arg1: memref<576x128xbf16, #tpu.memory_space<vmem>>, %arg2: memref<1x128xf32, #tpu.memory_space<vmem>>, %arg3: memref<2x128xf32, #tpu.memory_space<vmem>>, %arg4: memref<1x128xf32, #tpu.memory_space<vmem>>, %arg5: memref<1x1xf32, #tpu.memory_space<vmem>>, %arg6: memref<2x1xf32, #tpu.memory_space<vmem>>) attributes {dimension_semantics = [], scalar_prefetch = 0 : i64, scratch_operands = 0 : i64, tpu.core_type = #tpu.core_type<tc>} {
    %c0 = arith.constant 0 : index
    %c0_0 = arith.constant 0 : index
    %0 = vector.load %arg0[%c0, %c0_0] : memref<2x576xbf16, #tpu.memory_space<vmem>>, vector<2x576xbf16>
    %c0_1 = arith.constant 0 : index
    %c0_2 = arith.constant 0 : index
    %1 = vector.load %arg1[%c0_1, %c0_2] : memref<576x128xbf16, #tpu.memory_space<vmem>>, vector<576x128xbf16>
    %cst = arith.constant dense<0.000000e+00> : vector<2x128xf32>
    %2 = tpu.matmul %0, %1, %cst {dimension_numbers = #tpu.dot_dimension_numbers<[1], [0], [0], [1], [0, 0, 1, 1], [], []>} : vector<2x576xbf16>, vector<576x128xbf16>, vector<2x128xf32> -> vector<2x128xf32>
    %c0_3 = arith.constant 0 : index
    %c0_4 = arith.constant 0 : index
    %3 = vector.load %arg2[%c0_3, %c0_4] : memref<1x128xf32, #tpu.memory_space<vmem>>, vector<1x128xf32>
    %4 = vector.broadcast %3 : vector<1x128xf32> to vector<2x128xf32>
    %5 = arith.addf %2, %4 : vector<2x128xf32>
    %cst_5 = arith.constant 2.000000e-01 : f32
    %6 = vector.broadcast %cst_5 : f32 to vector<2x128xf32>
    %7 = arith.mulf %6, %5 : vector<2x128xf32>
    %8 = arith.maximumf %5, %7 : vector<2x128xf32>
    %c0_6 = arith.constant 0 : index
    %c0_7 = arith.constant 0 : index
    %9 = vector.load %arg3[%c0_6, %c0_7] : memref<2x128xf32, #tpu.memory_space<vmem>>, vector<2x128xf32>
    %cst_8 = arith.constant dense<0.000000e+00> : vector<128xf32>
    %10 = vector.multi_reduction <add>, %8, %cst_8 [0] : vector<2x128xf32> to vector<128xf32>
    %11 = vector.shape_cast %10 : vector<128xf32> to vector<1x128xf32>
    %cst_9 = arith.constant 2.000000e+00 : f32
    %12 = vector.broadcast %cst_9 : f32 to vector<1x128xf32>
    %13 = arith.divf %11, %12 : vector<1x128xf32>
    %14 = vector.broadcast %13 : vector<1x128xf32> to vector<2x128xf32>
    %15 = arith.subf %8, %14 : vector<2x128xf32>
    %16 = arith.mulf %15, %15 : vector<2x128xf32>
    %cst_10 = arith.constant dense<0.000000e+00> : vector<128xf32>
    %17 = vector.multi_reduction <add>, %16, %cst_10 [0] : vector<2x128xf32> to vector<128xf32>
    %18 = vector.shape_cast %17 : vector<128xf32> to vector<1x128xf32>
    %cst_11 = arith.constant 2.000000e+00 : f32
    %19 = vector.broadcast %cst_11 : f32 to vector<1x128xf32>
    %20 = arith.divf %18, %19 : vector<1x128xf32>
    %cst_12 = arith.constant 8.000000e-01 : f32
    %21 = vector.broadcast %cst_12 : f32 to vector<1x128xf32>
    %22 = arith.addf %20, %21 : vector<1x128xf32>
    %23 = math.rsqrt %22 : vector<1x128xf32>
    %24 = vector.broadcast %23 : vector<1x128xf32> to vector<2x128xf32>
    %25 = arith.mulf %15, %24 : vector<2x128xf32>
    %26 = vector.extract_strided_slice %9 {offsets = [0, 0], sizes = [1, 128], strides = [1, 1]} : vector<2x128xf32> to vector<1x128xf32>
    %27 = vector.broadcast %26 : vector<1x128xf32> to vector<2x128xf32>
    %28 = arith.mulf %25, %27 : vector<2x128xf32>
    %29 = vector.extract_strided_slice %9 {offsets = [1, 0], sizes = [1, 128], strides = [1, 1]} : vector<2x128xf32> to vector<1x128xf32>
    %30 = vector.broadcast %29 : vector<1x128xf32> to vector<2x128xf32>
    %31 = arith.addf %28, %30 : vector<2x128xf32>
    %c0_13 = arith.constant 0 : index
    %c0_14 = arith.constant 0 : index
    %32 = vector.load %arg4[%c0_13, %c0_14] : memref<1x128xf32, #tpu.memory_space<vmem>>, vector<1x128xf32>
    %33 = vector.broadcast %32 : vector<1x128xf32> to vector<2x128xf32>
    %34 = arith.mulf %31, %33 : vector<2x128xf32>
    %cst_15 = arith.constant dense<0.000000e+00> : vector<2xf32>
    %35 = vector.multi_reduction <add>, %34, %cst_15 [1] : vector<2x128xf32> to vector<2xf32>
    %36 = vector.shape_cast %35 : vector<2xf32> to vector<2x1xf32>
    %c0_16 = arith.constant 0 : index
    %c0_17 = arith.constant 0 : index
    %37 = vector.load %arg5[%c0_16, %c0_17] : memref<1x1xf32, #tpu.memory_space<vmem>>, vector<1x1xf32>
    %38 = vector.broadcast %37 : vector<1x1xf32> to vector<2x1xf32>
    %39 = arith.addf %36, %38 : vector<2x1xf32>
    %40 = arith.negf %39 : vector<2x1xf32>
    %41 = math.exp %40 : vector<2x1xf32>
    %cst_18 = arith.constant 1.000000e+00 : f32
    %42 = vector.broadcast %cst_18 : f32 to vector<2x1xf32>
    %43 = arith.addf %42, %41 : vector<2x1xf32>
    %44 = arith.divf %42, %43 : vector<2x1xf32>
    %c0_19 = arith.constant 0 : index
    %c0_20 = arith.constant 0 : index
    %45 = vector.load %arg6[%c0_19, %c0_20] : memref<2x1xf32, #tpu.memory_space<vmem>>, vector<2x1xf32>
    tpu.vector_store %arg6[%c0_19, %c0_20], %44 {strides = array<i32>} : memref<2x1xf32, #tpu.memory_space<vmem>>, vector<2x1xf32>,
    return
  }
}

</mosaic_0001>

<llo_original>
// kernel: discriminator_forward.4
$region0: #{discriminator_forward.4}
  #allocation0 [shape = 'u32[]', space=smem, size = 0x4, offset = 0x4, fixed_abs, tag = 'smem constant byte address 0x4 - core index']
  #allocation1 [shape = 'u32[144,128]{1,0:T(1,128)}', space=vmem, size = 0x12000, scoped, tag = 'internal scratch']
  %s0 = inlined_call_operand.vmem [shape: bf16[128,36], index: 0, kind: input, shape index: {}]
  %s1 = inlined_call_operand.vmem [shape: bf16[36,16], index: 1, kind: input, shape index: {}]
  %s2 = inlined_call_operand.vmem [shape: f32[1,16], index: 2, kind: input, shape index: {}]
  %s3 = inlined_call_operand.vmem [shape: bf16[128,16], index: 3, kind: output, shape index: {}]
  %s4 = sld [smem:[#allocation0]]
  $region22: #{discriminator_forward.4} parent=0
    _
  %s6 = ssub.s32 1, %s4
  %s7 = scalar_select 0, %s6, %s4
  // Predicated region
  $region2: #{discriminator_forward.4} parent=0 // pred_check
    _
  $region3: #{discriminator_forward.4} parent=0 // pred_check_branch
    %9 = sbr.rel (0) target = $region5
  $region4: #{discriminator_forward.4} parent=0 // pred_region
    _
  $region5: #{discriminator_forward.4} parent=0 // pred_fallthru
    _
  // Predicated region
  $region6: #{discriminator_forward.4} parent=0 // pred_check
    _
  $region7: #{discriminator_forward.4} parent=0 // pred_check_branch
    %11 = sbr.rel (0) target = $region9
  $region8: #{discriminator_forward.4} parent=0 // pred_region
    _
  $region9: #{discriminator_forward.4} parent=0 // pred_fallthru
    _
  // Predicated region
  $region10: #{discriminator_forward.4} parent=0 // pred_check
    _
  $region11: #{discriminator_forward.4} parent=0 // pred_check_branch
    %13 = sbr.rel (0) target = $region13
  $region12: #{discriminator_forward.4} parent=0 // pred_region
    _
  $region13: #{discriminator_forward.4} parent=0 // pred_fallthru
    _
  %v15 = vld [vmem:[%s0] sm:$0xf]
  %v16 = vld [vmem:[%s0 + $0x4] sm:$0xf]
  %v17 = vld [vmem:[%s0 + $0x8] sm:$0xf]
  %v18 = vld [vmem:[%s0 + $0xc] sm:$0xf]
  %v19 = vld [vmem:[%s0 + $0x10] sm:$0xf]
  %v20 = vld [vmem:[%s0 + $0x14] sm:$0xf]
  %v21 = vld [vmem:[%s0 + $0x18] sm:$0xf]
  %v22 = vld [vmem:[%s0 + $0x1c] sm:$0xf]
  %v23 = vld [vmem:[%s0 + $0x20] sm:$0xf]
  %v24 = vld [vmem:[%s0 + $0x24] sm:$0xf]
  %v25 = vld [vmem:[%s0 + $0x28] sm:$0xf]
  %v26 = vld [vmem:[%s0 + $0x2c] sm:$0xf]
  %v27 = vld [vmem:[%s0 + $0x30] sm:$0xf]
  %v28 = vld [vmem:[%s0 + $0x34] sm:$0xf]
  %v29 = vld [vmem:[%s0 + $0x38] sm:$0xf]
  %v30 = vld [vmem:[%s0 + $0x3c] sm:$0xf]
  %v31 = vld [vmem:[%s1] sm:$0xf]
  %v32 = vld [vmem:[%s1 + $0x4] sm:$0xf]
  %v33 = vld [vmem:[%s1 + $0x8] sm:$0xf]
  %v34 = vld [vmem:[%s1 + $0xc] sm:$0xf]
  %v35 = vld [vmem:[%s1 + $0x10] sm:$0x3]
  %v36 = vld [vmem:[%s2] sm:$0x1]
  %v38 = vlaneseq
  %v39 = vshrl.u32 %v38, 7
  %v40 = vsub.s32 0, %v39
  %v41 = vrot.slane %v36, %v40
  %v59 = vunpack.c.l.b16 %v15
  %v60 = vunpack.c.l.b16 %v16
  %v61 = vunpack.c.l.b16 %v17
  %v62 = vunpack.c.l.b16 %v18
  %v63 = vunpack.c.l.b16 %v19
  %v64 = vunpack.c.l.b16 %v20
  %v65 = vunpack.c.l.b16 %v21
  %v66 = vunpack.c.l.b16 %v22
  %v67 = vunpack.c.l.b16 %v23
  %v68 = vunpack.c.l.b16 %v24
  %v69 = vunpack.c.l.b16 %v25
  %v70 = vunpack.c.l.b16 %v26
  %v71 = vunpack.c.l.b16 %v27
  %v72 = vunpack.c.l.b16 %v28
  %v73 = vunpack.c.l.b16 %v29
  %v74 = vunpack.c.l.b16 %v30
  %v75 = vpack.c.b16 %v60, %v59
  %v76 = vpack.c.b16 %v62, %v61
  %v77 = vpack.c.b16 %v64, %v63
  %v78 = vpack.c.b16 %v66, %v65
  %v79 = vpack.c.b16 %v68, %v67
  %v80 = vpack.c.b16 %v70, %v69
  %v81 = vpack.c.b16 %v72, %v71
  %v82 = vpack.c.b16 %v74, %v73
  %v88 = vunpack.c.l.b16 %v31
  %v89 = vunpack.c.l.b16 %v32
  %v90 = vunpack.c.l.b16 %v33
  %v91 = vunpack.c.l.b16 %v34
  %v92 = vunpack.c.l.b16 %v35
  %v93 = vpack.c.b16 %v89, %v88
  %v94 = vpack.c.b16 %v91, %v90
  %v95 = vpack.c.b16 %v92, %v92
  %vm98 = vcmask 293888
  %v100 = vsel %vm98, %v75, 0
  %v103 = vsel %vm98, %v76, 0
  %v106 = vsel %vm98, %v77, 0
  %v109 = vsel %vm98, %v78, 0
  %v112 = vsel %vm98, %v79, 0
  %v115 = vsel %vm98, %v80, 0
  %v118 = vsel %vm98, %v81, 0
  %v121 = vsel %vm98, %v82, 0
  %vm123 = vcmask 1041408
  %v125 = vsel %vm123, %v95, 0
  %127 = vmatprep.subr.bf16.mxu0 0
  %128 = vmatpush1.bf16.msra.mxu0 %v93
  %129 = vmatprep.subr.bf16.mxu0 0
  %130 = vmatpush1.bf16.msra.mxu0 %v94
  %131 = vmatprep.subr.bf16.mxu0 0
  %132 = vmatpush1.bf16.msra.mxu0 %v125
  %133 = vmatprep.subr.bf16.mxu0 0
  %134 = vmatpush1.bf16.msra.mxu0 0
  %135 = vmatprep.subr.bf16.mxu0 0
  %136 = vmatpush1.bf16.msra.mxu0 0
  %137 = vmatprep.subr.bf16.mxu0 0
  %138 = vmatpush1.bf16.msra.mxu0 0
  %139 = vmatprep.subr.bf16.mxu0 0
  %140 = vmatpush1.bf16.msra.mxu0 0
  %141 = vmatprep.subr.bf16.mxu0 0
  %142 = vmatpush1.bf16.msra.mxu0 0
  %143 = vmatprep.subr.bf16.mxu0 0
  %144 = vmatpush1.bf16.msra.mxu0 0
  %145 = vmatprep.subr.bf16.mxu0 0
  %146 = vmatpush1.bf16.msra.mxu0 0
  %147 = vmatprep.subr.bf16.mxu0 0
  %148 = vmatpush1.bf16.msra.mxu0 0
  %149 = vmatprep.subr.bf16.mxu0 0
  %150 = vmatpush1.bf16.msra.mxu0 0
  %151 = vmatprep.subr.bf16.mxu0 0
  %152 = vmatpush1.bf16.msra.mxu0 0
  %153 = vmatprep.subr.bf16.mxu0 0
  %154 = vmatpush1.bf16.msra.mxu0 0
  %155 = vmatprep.subr.bf16.mxu0 0
  %156 = vmatpush1.bf16.msra.mxu0 0
  %157 = vmatprep.subr.bf16.mxu0 0
  %158 = vmatpush1.bf16.msra.mxu0 0
  %159 = vmatprep.mubr.bf16.mxu0 0
  %160 = vmatmul.mubr.bf16.gmra.mrb[0].mxu0 %v100
  %v161 = vpop.f32.mrb[0].mxu0
  %v162 = vadd.f32 %v41, %v161
  %v163 = vpop.f32.mrb[0].mxu0
  %v164 = vpop.f32.mrb[0].mxu0
  %v165 = vadd.f32 %v41, %v164
  %v166 = vpop.f32.mrb[0].mxu0
  %167 = vmatprep.mubr.bf16.mxu0 0
  %168 = vmatmul.mubr.bf16.gmra.mrb[0].mxu0 %v103
  %v169 = vpop.f32.mrb[0].mxu0
  %v170 = vadd.f32 %v41, %v169
  %v171 = vpop.f32.mrb[0].mxu0
  %v172 = vpop.f32.mrb[0].mxu0
  %v173 = vadd.f32 %v41, %v172
  %v174 = vpop.f32.mrb[0].mxu0
  %175 = vmatprep.mubr.bf16.mxu0 0
  %176 = vmatmul.mubr.bf16.gmra.mrb[0].mxu0 %v106
  %v177 = vpop.f32.mrb[0].mxu0
  %v178 = vadd.f32 %v41, %v177
  %v179 = vpop.f32.mrb[0].mxu0
  %v180 = vpop.f32.mrb[0].mxu0
  %v181 = vadd.f32 %v41, %v180
  %v182 = vpop.f32.mrb[0].mxu0
  %183 = vmatprep.mubr.bf16.mxu0 0
  %184 = vmatmul.mubr.bf16.gmra.mrb[0].mxu0 %v109
  %v185 = vpop.f32.mrb[0].mxu0
  %v186 = vadd.f32 %v41, %v185
  %v187 = vpop.f32.mrb[0].mxu0
  %v188 = vpop.f32.mrb[0].mxu0
  %v189 = vadd.f32 %v41, %v188
  %v190 = vpop.f32.mrb[0].mxu0
  %191 = vmatprep.mubr.bf16.mxu0 0
  %192 = vmatmul.mubr.bf16.gmra.mrb[0].mxu0 %v112
  %v193 = vpop.f32.mrb[0].mxu0
  %v194 = vadd.f32 %v41, %v193
  %v195 = vpop.f32.mrb[0].mxu0
  %v196 = vpop.f32.mrb[0].mxu0
  %v197 = vadd.f32 %v41, %v196
  %v198 = vpop.f32.mrb[0].mxu0
  %199 = vmatprep.mubr.bf16.mxu0 0
  %200 = vmatmul.mubr.bf16.gmra.mrb[0].mxu0 %v115
  %v201 = vpop.f32.mrb[0].mxu0
  %v202 = vadd.f32 %v41, %v201
  %v203 = vpop.f32.mrb[0].mxu0
  %v204 = vpop.f32.mrb[0].mxu0
  %v205 = vadd.f32 %v41, %v204
  %v206 = vpop.f32.mrb[0].mxu0
  %207 = vmatprep.mubr.bf16.mxu0 0
  %208 = vmatmul.mubr.bf16.gmra.mrb[0].mxu0 %v118
  %v209 = vpop.f32.mrb[0].mxu0
  %v210 = vadd.f32 %v41, %v209
  %v211 = vpop.f32.mrb[0].mxu0
  %v212 = vpop.f32.mrb[0].mxu0
  %v213 = vadd.f32 %v41, %v212
  %v214 = vpop.f32.mrb[0].mxu0
  %215 = vmatprep.mubr.bf16.mxu0 0
  %216 = vmatmul.mubr.bf16.gmra.mrb[0].mxu0 %v121
  %v217 = vpop.f32.mrb[0].mxu0
  %v218 = vadd.f32 %v41, %v217
  %v219 = vpop.f32.mrb[0].mxu0
  %v220 = vpop.f32.mrb[0].mxu0
  %v221 = vadd.f32 %v41, %v220
  %v222 = vpop.f32.mrb[0].mxu0
  %223 = vdwg.mxu0
  %v224 = vmul.f32 %v162, 0.2
  %v225 = vmul.f32 %v165, 0.2
  %v226 = vmul.f32 %v170, 0.2
  %v227 = vmul.f32 %v173, 0.2
  %v228 = vmul.f32 %v178, 0.2
  %v229 = vmul.f32 %v181, 0.2
  %v230 = vmul.f32 %v186, 0.2
  %v231 = vmul.f32 %v189, 0.2
  %v232 = vmul.f32 %v194, 0.2
  %v233 = vmul.f32 %v197, 0.2
  %v234 = vmul.f32 %v202, 0.2
  %v235 = vmul.f32 %v205, 0.2
  %v236 = vmul.f32 %v210, 0.2
  %v237 = vmul.f32 %v213, 0.2
  %v238 = vmul.f32 %v218, 0.2
  %v239 = vmul.f32 %v221, 0.2
  %v240 = vmax.f32 %v162, %v224
  %v241 = vmax.f32 %v165, %v225
  %v242 = vmax.f32 %v170, %v226
  %v243 = vmax.f32 %v173, %v227
  %v244 = vmax.f32 %v178, %v228
  %v245 = vmax.f32 %v181, %v229
  %v246 = vmax.f32 %v186, %v230
  %v247 = vmax.f32 %v189, %v231
  %v248 = vmax.f32 %v194, %v232
  %v249 = vmax.f32 %v197, %v233
  %v250 = vmax.f32 %v202, %v234
  %v251 = vmax.f32 %v205, %v235
  %v252 = vmax.f32 %v210, %v236
  %v253 = vmax.f32 %v213, %v237
  %v254 = vmax.f32 %v218, %v238
  %v255 = vmax.f32 %v221, %v239
  %v256 = vpack.c.bf16 %v241, %v240
  %v257 = vpack.c.bf16 %v243, %v242
  %v258 = vpack.c.bf16 %v245, %v244
  %v259 = vpack.c.bf16 %v247, %v246
  %v260 = vpack.c.bf16 %v249, %v248
  %v261 = vpack.c.bf16 %v251, %v250
  %v262 = vpack.c.bf16 %v253, %v252
  %v263 = vpack.c.bf16 %v255, %v254
  %v272 = vunpack.c.l.b16 %v256
  %v273 = vunpack.c.h.b16 %v256
  %v274 = vunpack.c.l.b16 %v257
  %v275 = vunpack.c.h.b16 %v257
  %v276 = vunpack.c.l.b16 %v258
  %v277 = vunpack.c.h.b16 %v258
  %v278 = vunpack.c.l.b16 %v259
  %v279 = vunpack.c.h.b16 %v259
  %v280 = vunpack.c.l.b16 %v260
  %v281 = vunpack.c.h.b16 %v260
  %v282 = vunpack.c.l.b16 %v261
  %v283 = vunpack.c.h.b16 %v261
  %v284 = vunpack.c.l.b16 %v262
  %v285 = vunpack.c.h.b16 %v262
  %v286 = vunpack.c.l.b16 %v263
  %v287 = vunpack.c.h.b16 %v263
  %v288 = vpack.c.b16 %v272, %v272
  %v289 = vpack.c.b16 %v273, %v273
  %v290 = vpack.c.b16 %v274, %v274
  %v291 = vpack.c.b16 %v275, %v275
  %v292 = vpack.c.b16 %v276, %v276
  %v293 = vpack.c.b16 %v277, %v277
  %v294 = vpack.c.b16 %v278, %v278
  %v295 = vpack.c.b16 %v279, %v279
  %v296 = vpack.c.b16 %v280, %v280
  %v297 = vpack.c.b16 %v281, %v281
  %v298 = vpack.c.b16 %v282, %v282
  %v299 = vpack.c.b16 %v283, %v283
  %v300 = vpack.c.b16 %v284, %v284
  %v301 = vpack.c.b16 %v285, %v285
  %v302 = vpack.c.b16 %v286, %v286
  %v303 = vpack.c.b16 %v287, %v287
  %vm320 = vcmask 125952
  %321 = vst.msk [vmem:[%s3] sm:$0xf] %vm320, %v288
  %322 = vst.msk [vmem:[%s3 + $0x4] sm:$0xf] %vm320, %v289
  %323 = vst.msk [vmem:[%s3 + $0x8] sm:$0xf] %vm320, %v290
  %324 = vst.msk [vmem:[%s3 + $0xc] sm:$0xf] %vm320, %v291
  %325 = vst.msk [vmem:[%s3 + $0x10] sm:$0xf] %vm320, %v292
  %326 = vst.msk [vmem:[%s3 + $0x14] sm:$0xf] %vm320, %v293
  %327 = vst.msk [vmem:[%s3 + $0x18] sm:$0xf] %vm320, %v294
  %328 = vst.msk [vmem:[%s3 + $0x1c] sm:$0xf] %vm320, %v295
  %329 = vst.msk [vmem:[%s3 + $0x20] sm:$0xf] %vm320, %v296
  %330 = vst.msk [vmem:[%s3 + $0x24] sm:$0xf] %vm320, %v297
  %331 = vst.msk [vmem:[%s3 + $0x28] sm:$0xf] %vm320, %v298
  %332 = vst.msk [vmem:[%s3 + $0x2c] sm:$0xf] %vm320, %v299
  %333 = vst.msk [vmem:[%s3 + $0x30] sm:$0xf] %vm320, %v300
  %334 = vst.msk [vmem:[%s3 + $0x34] sm:$0xf] %vm320, %v301
  %335 = vst.msk [vmem:[%s3 + $0x38] sm:$0xf] %vm320, %v302
  %336 = vst.msk [vmem:[%s3 + $0x3c] sm:$0xf] %vm320, %v303
  // Predicated region
  $region14: #{discriminator_forward.4} parent=0 // pred_check
    _
  $region15: #{discriminator_forward.4} parent=0 // pred_check_branch
    %338 = sbr.rel (0) target = $region17
  $region16: #{discriminator_forward.4} parent=0 // pred_region
    _
  $region17: #{discriminator_forward.4} parent=0 // pred_fallthru
    _
  // Predicated region
  $region18: #{discriminator_forward.4} parent=0 // pred_check
    _
  $region19: #{discriminator_forward.4} parent=0 // pred_check_branch
    %340 = sbr.rel (0) target = $region21
  $region20: #{discriminator_forward.4} parent=0 // pred_region
    _
  $region21: #{discriminator_forward.4} parent=0 // pred_fallthru
    _

// kernel: discriminator_forward.5
$region0: #{discriminator_forward.5}
  #allocation0 [shape = 'u32[]', space=smem, size = 0x4, offset = 0x4, fixed_abs, tag = 'smem constant byte address 0x4 - core index']
  #allocation1 [shape = 'u32[144,128]{1,0:T(1,128)}', space=vmem, size = 0x12000, scoped, tag = 'internal scratch']
  %s0 = inlined_call_operand.vmem [shape: bf16[32,144], index: 0, kind: input, shape index: {}]
  %s1 = inlined_call_operand.vmem [shape: bf16[144,32], index: 1, kind: input, shape index: {}]
  %s2 = inlined_call_operand.vmem [shape: f32[1,32], index: 2, kind: input, shape index: {}]
  %s3 = inlined_call_operand.vmem [shape: f32[2,32], index: 3, kind: input, shape index: {}]
  %s4 = inlined_call_operand.vmem [shape: bf16[32,32], index: 4, kind: output, shape index: {}]
  %s5 = sld [smem:[#allocation0]]
  $region26: #{discriminator_forward.5} parent=0
    _
  %s7 = ssub.s32 1, %s5
  %s8 = scalar_select 0, %s7, %s5
  // Predicated region
  $region2: #{discriminator_forward.5} parent=0 // pred_check
    _
  $region3: #{discriminator_forward.5} parent=0 // pred_check_branch
    %10 = sbr.rel (0) target = $region5
  $region4: #{discriminator_forward.5} parent=0 // pred_region
    _
  $region5: #{discriminator_forward.5} parent=0 // pred_fallthru
    _
  // Predicated region
  $region6: #{discriminator_forward.5} parent=0 // pred_check
    _
  $region7: #{discriminator_forward.5} parent=0 // pred_check_branch
    %12 = sbr.rel (0) target = $region9
  $region8: #{discriminator_forward.5} parent=0 // pred_region
    _
  $region9: #{discriminator_forward.5} parent=0 // pred_fallthru
    _
  // Predicated region
  $region10: #{discriminator_forward.5} parent=0 // pred_check
    _
  $region11: #{discriminator_forward.5} parent=0 // pred_check_branch
    %14 = sbr.rel (0) target = $region13
  $region12: #{discriminator_forward.5} parent=0 // pred_region
    _
  $region13: #{discriminator_forward.5} parent=0 // pred_fallthru
    _
  // Predicated region
  $region14: #{discriminator_forward.5} parent=0 // pred_check
    _
  $region15: #{discriminator_forward.5} parent=0 // pred_check_branch
    %16 = sbr.rel (0) target = $region17
  $region16: #{discriminator_forward.5} parent=0 // pred_region
    _
  $region17: #{discriminator_forward.5} parent=0 // pred_fallthru
    _
  %v18 = vld [vmem:[%s0] sm:$0xff]
  %v19 = vld [vmem:[%s0 + $0x8] sm:$0xff]
  %v20 = vld [vmem:[%s0 + $0x10] sm:$0xff]
  %v21 = vld [vmem:[%s0 + $0x18] sm:$0xff]
  %v22 = vld [vmem:[%s1] sm:$0xf]
  %v23 = vld [vmem:[%s1 + $0x4] sm:$0xf]
  %v24 = vld [vmem:[%s1 + $0x8] sm:$0xf]
  %v25 = vld [vmem:[%s1 + $0xc] sm:$0xf]
  %v26 = vld [vmem:[%s1 + $0x10] sm:$0xf]
  %v27 = vld [vmem:[%s1 + $0x14] sm:$0xf]
  %v28 = vld [vmem:[%s1 + $0x18] sm:$0xf]
  %v29 = vld [vmem:[%s1 + $0x1c] sm:$0xf]
  %v30 = vld [vmem:[%s1 + $0x20] sm:$0xf]
  %v31 = vld [vmem:[%s1 + $0x24] sm:$0xf]
  %v32 = vld [vmem:[%s1 + $0x28] sm:$0xf]
  %v33 = vld [vmem:[%s1 + $0x2c] sm:$0xf]
  %v34 = vld [vmem:[%s1 + $0x30] sm:$0xf]
  %v35 = vld [vmem:[%s1 + $0x34] sm:$0xf]
  %v36 = vld [vmem:[%s1 + $0x38] sm:$0xf]
  %v37 = vld [vmem:[%s1 + $0x3c] sm:$0xf]
  %v38 = vld [vmem:[%s1 + $0x40] sm:$0xf]
  %v39 = vld [vmem:[%s1 + $0x44] sm:$0xf]
  %v40 = vld [vmem:[%s2] sm:$0x1]
  %v42 = vlaneseq
  %v43 = vshrl.u32 %v42, 7
  %v44 = vsub.s32 0, %v43
  %v45 = vrot.slane %v40, %v44
  %v51 = vunpack.c.l.b16 %v18
  %v52 = vunpack.c.h.b16 %v18
  %v53 = vunpack.c.l.b16 %v19
  %v54 = vunpack.c.h.b16 %v19
  %v55 = vunpack.c.l.b16 %v20
  %v56 = vunpack.c.h.b16 %v20
  %v57 = vunpack.c.l.b16 %v21
  %v58 = vunpack.c.h.b16 %v21
  %v59 = vpack.c.b16 %v53, %v51
  %v60 = vpack.c.b16 %v54, %v52
  %v61 = vpack.c.b16 %v57, %v55
  %v62 = vpack.c.b16 %v58, %v56
  %v83 = vunpack.c.l.b16 %v22
  %v84 = vunpack.c.l.b16 %v23
  %v85 = vunpack.c.l.b16 %v24
  %v86 = vunpack.c.l.b16 %v25
  %v87 = vunpack.c.l.b16 %v26
  %v88 = vunpack.c.l.b16 %v27
  %v89 = vunpack.c.l.b16 %v28
  %v90 = vunpack.c.l.b16 %v29
  %v91 = vunpack.c.l.b16 %v30
  %v92 = vunpack.c.l.b16 %v31
  %v93 = vunpack.c.l.b16 %v32
  %v94 = vunpack.c.l.b16 %v33
  %v95 = vunpack.c.l.b16 %v34
  %v96 = vunpack.c.l.b16 %v35
  %v97 = vunpack.c.l.b16 %v36
  %v98 = vunpack.c.l.b16 %v37
  %v99 = vunpack.c.l.b16 %v38
  %v100 = vunpack.c.l.b16 %v39
  %v101 = vpack.c.b16 %v84, %v83
  %v102 = vpack.c.b16 %v86, %v85
  %v103 = vpack.c.b16 %v88, %v87
  %v104 = vpack.c.b16 %v90, %v89
  %v105 = vpack.c.b16 %v92, %v91
  %v106 = vpack.c.b16 %v94, %v93
  %v107 = vpack.c.b16 %v96, %v95
  %v108 = vpack.c.b16 %v98, %v97
  %v109 = vpack.c.b16 %v100, %v99
  %vm119 = vcmask 130048
  %v121 = vsel %vm119, %v60, 0
  %v124 = vsel %vm119, %v62, 0
  %126 = vmatprep.subr.bf16.mxu0 0
  %127 = vmatpush1.bf16.msra.mxu0 %v101
  %128 = vmatprep.subr.bf16.mxu0 0
  %129 = vmatpush1.bf16.msra.mxu0 %v102
  %130 = vmatprep.subr.bf16.mxu0 0
  %131 = vmatpush1.bf16.msra.mxu0 %v103
  %132 = vmatprep.subr.bf16.mxu0 0
  %133 = vmatpush1.bf16.msra.mxu0 %v104
  %134 = vmatprep.subr.bf16.mxu0 0
  %135 = vmatpush1.bf16.msra.mxu0 %v105
  %136 = vmatprep.subr.bf16.mxu0 0
  %137 = vmatpush1.bf16.msra.mxu0 %v106
  %138 = vmatprep.subr.bf16.mxu0 0
  %139 = vmatpush1.bf16.msra.mxu0 %v107
  %140 = vmatprep.subr.bf16.mxu0 0
  %141 = vmatpush1.bf16.msra.mxu0 %v108
  %142 = vmatprep.subr.bf16.mxu0 0
  %143 = vmatpush1.bf16.msra.mxu0 %v109
  %144 = vmatprep.subr.bf16.mxu0 0
  %145 = vmatpush1.bf16.msra.mxu0 0
  %146 = vmatprep.subr.bf16.mxu0 0
  %147 = vmatpush1.bf16.msra.mxu0 0
  %148 = vmatprep.subr.bf16.mxu0 0
  %149 = vmatpush1.bf16.msra.mxu0 0
  %150 = vmatprep.subr.bf16.mxu0 0
  %151 = vmatpush1.bf16.msra.mxu0 0
  %152 = vmatprep.subr.bf16.mxu0 0
  %153 = vmatpush1.bf16.msra.mxu0 0
  %154 = vmatprep.subr.bf16.mxu0 0
  %155 = vmatpush1.bf16.msra.mxu0 0
  %156 = vmatprep.subr.bf16.mxu0 0
  %157 = vmatpush1.bf16.msra.mxu0 0
  %158 = vmatprep.mubr.bf16.mxu0 %v121
  %159 = vmatmul.mubr.bf16.gmra.mrb[0].mxu0 %v59
  %v160 = vpop.f32.mrb[0].mxu0
  %v161 = vadd.f32 %v45, %v160
  %v162 = vpop.f32.mrb[0].mxu0
  %v163 = vpop.f32.mrb[0].mxu0
  %v164 = vadd.f32 %v45, %v163
  %v165 = vpop.f32.mrb[0].mxu0
  %166 = vmatprep.mubr.bf16.mxu0 %v124
  %167 = vmatmul.mubr.bf16.gmra.mrb[0].mxu0 %v61
  %v168 = vpop.f32.mrb[0].mxu0
  %v169 = vadd.f32 %v45, %v168
  %v170 = vpop.f32.mrb[0].mxu0
  %v171 = vpop.f32.mrb[0].mxu0
  %v172 = vadd.f32 %v45, %v171
  %v173 = vpop.f32.mrb[0].mxu0
  %174 = vdwg.mxu0
  %v175 = vmul.f32 %v161, 0.2
  %v176 = vmul.f32 %v164, 0.2
  %v177 = vmul.f32 %v169, 0.2
  %v178 = vmul.f32 %v172, 0.2
  %v179 = vmax.f32 %v161, %v175
  %v180 = vmax.f32 %v164, %v176
  %v181 = vmax.f32 %v169, %v177
  %v182 = vmax.f32 %v172, %v178
  %v183 = vld [vmem:[%s3] sm:$0x3]
  %vm184 = vcmask 261120
  %v185 = vsel %vm184, %v179, 0.0
  %v186 = vsel %vm184, %v180, 0.0
  %v187 = vadd.f32 %v185, %v186
  %v188 = vsel %vm184, %v181, 0.0
  %v189 = vadd.f32 %v187, %v188
  %v190 = vsel %vm184, %v182, 0.0
  %v191 = vadd.f32 %v189, %v190
  %v192 = vrot.slane %v191, 4
  %v193 = vadd.f32 %v191, %v192
  %v194 = vrot.slane %v193, 2
  %v195 = vadd.f32 %v193, %v194
  %v196 = vrot.slane %v195, 1
  %v197 = vadd.f32 %v195, %v196
  %v198 = vrcp.pop 32.0
  %v199 = vmul.f32 %v197, %v198
  %v200 = vsub.f32 %v179, %v199
  %v201 = vsub.f32 %v180, %v199
  %v202 = vsub.f32 %v181, %v199
  %v203 = vsub.f32 %v182, %v199
  %v204 = vmul.f32 %v200, %v200
  %v205 = vmul.f32 %v201, %v201
  %v206 = vmul.f32 %v202, %v202
  %v207 = vmul.f32 %v203, %v203
  %v208 = vsel %vm184, %v204, 0.0
  %v209 = vsel %vm184, %v205, 0.0
  %v210 = vadd.f32 %v208, %v209
  %v211 = vsel %vm184, %v206, 0.0
  %v212 = vadd.f32 %v210, %v211
  %v213 = vsel %vm184, %v207, 0.0
  %v214 = vadd.f32 %v212, %v213
  %v215 = vrot.slane %v214, 4
  %v216 = vadd.f32 %v214, %v215
  %v217 = vrot.slane %v216, 2
  %v218 = vadd.f32 %v216, %v217
  %v219 = vrot.slane %v218, 1
  %v220 = vadd.f32 %v218, %v219
  %v221 = vmul.f32 %v220, %v198
  %v222 = vadd.f32 %v221, 0.8
  %v223 = vrsqrt.pop %v222
  %v224 = vmul.f32 %v200, %v223
  %v225 = vmul.f32 %v201, %v223
  %v226 = vmul.f32 %v202, %v223
  %v227 = vmul.f32 %v203, %v223
  %v228 = vlaneseq
  %v229 = vshrl.u32 %v228, 7
  %v230 = vsub.s32 0, %v229
  %v231 = vrot.slane %v183, %v230
  %v232 = vmul.f32 %v224, %v231
  %v233 = vmul.f32 %v225, %v231
  %v234 = vmul.f32 %v226, %v231
  %v235 = vmul.f32 %v227, %v231
  %v236 = vlaneseq
  %v237 = vshrl.u32 %v236, 7
  %v238 = vsub.s32 1, %v237
  %v239 = vrot.slane %v183, %v238
  %v240 = vadd.f32 %v232, %v239
  %v241 = vadd.f32 %v233, %v239
  %v242 = vadd.f32 %v234, %v239
  %v243 = vadd.f32 %v235, %v239
  %v244 = vpack.c.bf16 %v241, %v240
  %v245 = vpack.c.bf16 %v243, %v242
  %v248 = vunpack.c.l.b16 %v244
  %v249 = vunpack.c.h.b16 %v244
  %v250 = vunpack.c.l.b16 %v245
  %v251 = vunpack.c.h.b16 %v245
  %v252 = vpack.c.b16 %v248, %v248
  %v253 = vpack.c.b16 %v249, %v249
  %v254 = vpack.c.b16 %v250, %v250
  %v255 = vpack.c.b16 %v251, %v251
  %vm260 = vcmask 257024
  %261 = vst.msk [vmem:[%s4] sm:$0xf] %vm260, %v252
  %262 = vst.msk [vmem:[%s4 + $0x4] sm:$0xf] %vm260, %v253
  %263 = vst.msk [vmem:[%s4 + $0x8] sm:$0xf] %vm260, %v254
  %264 = vst.msk [vmem:[%s4 + $0xc] sm:$0xf] %vm260, %v255
  // Predicated region
  $region18: #{discriminator_forward.5} parent=0 // pred_check
    _
  $region19: #{discriminator_forward.5} parent=0 // pred_check_branch
    %266 = sbr.rel (0) target = $region21
  $region20: #{discriminator_forward.5} parent=0 // pred_region
    _
  $region21: #{discriminator_forward.5} parent=0 // pred_fallthru
    _
  // Predicated region
  $region22: #{discriminator_forward.5} parent=0 // pred_check
    _
  $region23: #{discriminator_forward.5} parent=0 // pred_check_branch
    %268 = sbr.rel (0) target = $region25
  $region24: #{discriminator_forward.5} parent=0 // pred_region
    _
  $region25: #{discriminator_forward.5} parent=0 // pred_fallthru
    _

// kernel: discriminator_forward.6
$region0: #{discriminator_forward.6}
  #allocation0 [shape = 'u32[]', space=smem, size = 0x4, offset = 0x4, fixed_abs, tag = 'smem constant byte address 0x4 - core index']
  #allocation1 [shape = 'u32[144,128]{1,0:T(1,128)}', space=vmem, size = 0x12000, scoped, tag = 'internal scratch']
  %s0 = inlined_call_operand.vmem [shape: bf16[8,288], index: 0, kind: input, shape index: {}]
  %s1 = inlined_call_operand.vmem [shape: bf16[288,64], index: 1, kind: input, shape index: {}]
  %s2 = inlined_call_operand.vmem [shape: f32[1,64], index: 2, kind: input, shape index: {}]
  %s3 = inlined_call_operand.vmem [shape: f32[2,64], index: 3, kind: input, shape index: {}]
  %s4 = inlined_call_operand.vmem [shape: bf16[8,64], index: 4, kind: output, shape index: {}]
  %s5 = sld [smem:[#allocation0]]
  $region26: #{discriminator_forward.6} parent=0
    _
  %s7 = ssub.s32 1, %s5
  %s8 = scalar_select 0, %s7, %s5
  // Predicated region
  $region2: #{discriminator_forward.6} parent=0 // pred_check
    _
  $region3: #{discriminator_forward.6} parent=0 // pred_check_branch
    %10 = sbr.rel (0) target = $region5
  $region4: #{discriminator_forward.6} parent=0 // pred_region
    _
  $region5: #{discriminator_forward.6} parent=0 // pred_fallthru
    _
  // Predicated region
  $region6: #{discriminator_forward.6} parent=0 // pred_check
    _
  $region7: #{discriminator_forward.6} parent=0 // pred_check_branch
    %12 = sbr.rel (0) target = $region9
  $region8: #{discriminator_forward.6} parent=0 // pred_region
    _
  $region9: #{discriminator_forward.6} parent=0 // pred_fallthru
    _
  // Predicated region
  $region10: #{discriminator_forward.6} parent=0 // pred_check
    _
  $region11: #{discriminator_forward.6} parent=0 // pred_check_branch
    %14 = sbr.rel (0) target = $region13
  $region12: #{discriminator_forward.6} parent=0 // pred_region
    _
  $region13: #{discriminator_forward.6} parent=0 // pred_fallthru
    _
  // Predicated region
  $region14: #{discriminator_forward.6} parent=0 // pred_check
    _
  $region15: #{discriminator_forward.6} parent=0 // pred_check_branch
    %16 = sbr.rel (0) target = $region17
  $region16: #{discriminator_forward.6} parent=0 // pred_region
    _
  $region17: #{discriminator_forward.6} parent=0 // pred_fallthru
    _
  %v18 = vld [vmem:[%s0] sm:$0xff]
  %v19 = vld [vmem:[%s0 + $0x8] sm:$0xf]
  %v20 = vld [vmem:[%s1] sm:$0xf]
  %v21 = vld [vmem:[%s1 + $0x4] sm:$0xf]
  %v22 = vld [vmem:[%s1 + $0x8] sm:$0xf]
  %v23 = vld [vmem:[%s1 + $0xc] sm:$0xf]
  %v24 = vld [vmem:[%s1 + $0x10] sm:$0xf]
  %v25 = vld [vmem:[%s1 + $0x14] sm:$0xf]
  %v26 = vld [vmem:[%s1 + $0x18] sm:$0xf]
  %v27 = vld [vmem:[%s1 + $0x1c] sm:$0xf]
  %v28 = vld [vmem:[%s1 + $0x20] sm:$0xf]
  %v29 = vld [vmem:[%s1 + $0x24] sm:$0xf]
  %v30 = vld [vmem:[%s1 + $0x28] sm:$0xf]
  %v31 = vld [vmem:[%s1 + $0x2c] sm:$0xf]
  %v32 = vld [vmem:[%s1 + $0x30] sm:$0xf]
  %v33 = vld [vmem:[%s1 + $0x34] sm:$0xf]
  %v34 = vld [vmem:[%s1 + $0x38] sm:$0xf]
  %v35 = vld [vmem:[%s1 + $0x3c] sm:$0xf]
  %v36 = vld [vmem:[%s1 + $0x40] sm:$0xf]
  %v37 = vld [vmem:[%s1 + $0x44] sm:$0xf]
  %v38 = vld [vmem:[%s1 + $0x48] sm:$0xf]
  %v39 = vld [vmem:[%s1 + $0x4c] sm:$0xf]
  %v40 = vld [vmem:[%s1 + $0x50] sm:$0xf]
  %v41 = vld [vmem:[%s1 + $0x54] sm:$0xf]
  %v42 = vld [vmem:[%s1 + $0x58] sm:$0xf]
  %v43 = vld [vmem:[%s1 + $0x5c] sm:$0xf]
  %v44 = vld [vmem:[%s1 + $0x60] sm:$0xf]
  %v45 = vld [vmem:[%s1 + $0x64] sm:$0xf]
  %v46 = vld [vmem:[%s1 + $0x68] sm:$0xf]
  %v47 = vld [vmem:[%s1 + $0x6c] sm:$0xf]
  %v48 = vld [vmem:[%s1 + $0x70] sm:$0xf]
  %v49 = vld [vmem:[%s1 + $0x74] sm:$0xf]
  %v50 = vld [vmem:[%s1 + $0x78] sm:$0xf]
  %v51 = vld [vmem:[%s1 + $0x7c] sm:$0xf]
  %v52 = vld [vmem:[%s1 + $0x80] sm:$0xf]
  %v53 = vld [vmem:[%s1 + $0x84] sm:$0xf]
  %v54 = vld [vmem:[%s1 + $0x88] sm:$0xf]
  %v55 = vld [vmem:[%s1 + $0x8c] sm:$0xf]
  %v56 = vld [vmem:[%s2] sm:$0x1]
  %v58 = vlaneseq
  %v59 = vshrl.u32 %v58, 7
  %v60 = vsub.s32 0, %v59
  %v61 = vrot.slane %v56, %v60
  %v65 = vunpack.c.l.b16 %v18
  %v66 = vunpack.c.h.b16 %v18
  %v67 = vunpack.c.l.b16 %v19
  %v68 = vpack.c.b16 %v65, %v65
  %v69 = vpack.c.b16 %v66, %v66
  %v70 = vpack.c.b16 %v67, %v67
  %v109 = vunpack.c.l.b16 %v20
  %v110 = vunpack.c.l.b16 %v21
  %v111 = vunpack.c.l.b16 %v22
  %v112 = vunpack.c.l.b16 %v23
  %v113 = vunpack.c.l.b16 %v24
  %v114 = vunpack.c.l.b16 %v25
  %v115 = vunpack.c.l.b16 %v26
  %v116 = vunpack.c.l.b16 %v27
  %v117 = vunpack.c.l.b16 %v28
  %v118 = vunpack.c.l.b16 %v29
  %v119 = vunpack.c.l.b16 %v30
  %v120 = vunpack.c.l.b16 %v31
  %v121 = vunpack.c.l.b16 %v32
  %v122 = vunpack.c.l.b16 %v33
  %v123 = vunpack.c.l.b16 %v34
  %v124 = vunpack.c.l.b16 %v35
  %v125 = vunpack.c.l.b16 %v36
  %v126 = vunpack.c.l.b16 %v37
  %v127 = vunpack.c.l.b16 %v38
  %v128 = vunpack.c.l.b16 %v39
  %v129 = vunpack.c.l.b16 %v40
  %v130 = vunpack.c.l.b16 %v41
  %v131 = vunpack.c.l.b16 %v42
  %v132 = vunpack.c.l.b16 %v43
  %v133 = vunpack.c.l.b16 %v44
  %v134 = vunpack.c.l.b16 %v45
  %v135 = vunpack.c.l.b16 %v46
  %v136 = vunpack.c.l.b16 %v47
  %v137 = vunpack.c.l.b16 %v48
  %v138 = vunpack.c.l.b16 %v49
  %v139 = vunpack.c.l.b16 %v50
  %v140 = vunpack.c.l.b16 %v51
  %v141 = vunpack.c.l.b16 %v52
  %v142 = vunpack.c.l.b16 %v53
  %v143 = vunpack.c.l.b16 %v54
  %v144 = vunpack.c.l.b16 %v55
  %v145 = vpack.c.b16 %v110, %v109
  %v146 = vpack.c.b16 %v112, %v111
  %v147 = vpack.c.b16 %v114, %v113
  %v148 = vpack.c.b16 %v116, %v115
  %v149 = vpack.c.b16 %v118, %v117
  %v150 = vpack.c.b16 %v120, %v119
  %v151 = vpack.c.b16 %v122, %v121
  %v152 = vpack.c.b16 %v124, %v123
  %v153 = vpack.c.b16 %v126, %v125
  %v154 = vpack.c.b16 %v128, %v127
  %v155 = vpack.c.b16 %v130, %v129
  %v156 = vpack.c.b16 %v132, %v131
  %v157 = vpack.c.b16 %v134, %v133
  %v158 = vpack.c.b16 %v136, %v135
  %v159 = vpack.c.b16 %v138, %v137
  %v160 = vpack.c.b16 %v140, %v139
  %v161 = vpack.c.b16 %v142, %v141
  %v162 = vpack.c.b16 %v144, %v143
  %vm181 = vcmask 261120
  %v183 = vsel %vm181, %v70, 0
  %185 = vmatprep.subr.bf16.mxu0 0
  %186 = vmatpush1.bf16.msra.mxu0 %v145
  %187 = vmatprep.subr.bf16.mxu0 0
  %188 = vmatpush1.bf16.msra.mxu0 %v146
  %189 = vmatprep.subr.bf16.mxu0 0
  %190 = vmatpush1.bf16.msra.mxu0 %v147
  %191 = vmatprep.subr.bf16.mxu0 0
  %192 = vmatpush1.bf16.msra.mxu0 %v148
  %193 = vmatprep.subr.bf16.mxu0 0
  %194 = vmatpush1.bf16.msra.mxu0 %v149
  %195 = vmatprep.subr.bf16.mxu0 0
  %196 = vmatpush1.bf16.msra.mxu0 %v150
  %197 = vmatprep.subr.bf16.mxu0 0
  %198 = vmatpush1.bf16.msra.mxu0 %v151
  %199 = vmatprep.subr.bf16.mxu0 0
  %200 = vmatpush1.bf16.msra.mxu0 %v152
  %201 = vmatprep.subr.bf16.mxu0 0
  %202 = vmatpush1.bf16.msra.mxu0 %v153
  %203 = vmatprep.subr.bf16.mxu0 0
  %204 = vmatpush1.bf16.msra.mxu0 %v154
  %205 = vmatprep.subr.bf16.mxu0 0
  %206 = vmatpush1.bf16.msra.mxu0 %v155
  %207 = vmatprep.subr.bf16.mxu0 0
  %208 = vmatpush1.bf16.msra.mxu0 %v156
  %209 = vmatprep.subr.bf16.mxu0 0
  %210 = vmatpush1.bf16.msra.mxu0 %v157
  %211 = vmatprep.subr.bf16.mxu0 0
  %212 = vmatpush1.bf16.msra.mxu0 %v158
  %213 = vmatprep.subr.bf16.mxu0 0
  %214 = vmatpush1.bf16.msra.mxu0 %v159
  %215 = vmatprep.subr.bf16.mxu0 0
  %216 = vmatpush1.bf16.msra.mxu0 %v160
  %217 = vmatprep.mubr.bf16.mxu0 %v69
  %218 = vmatmul.mubr.bf16.gmra.mrb[0].mxu0 %v68
  %v219 = vpop.f32.mrb[0].mxu0
  %v220 = vadd.f32 %v61, %v219
  %v221 = vpop.f32.mrb[0].mxu0
  %v222 = vpop.f32.mrb[0].mxu0
  %v223 = vpop.f32.mrb[0].mxu0
  %224 = vdwg.mxu0
  %225 = vmatprep.subr.bf16.mxu0 0
  %226 = vmatpush1.bf16.msra.mxu0 %v161
  %227 = vmatprep.subr.bf16.mxu0 0
  %228 = vmatpush1.bf16.msra.mxu0 %v162
  %229 = vmatprep.subr.bf16.mxu0 0
  %230 = vmatpush1.bf16.msra.mxu0 0
  %231 = vmatprep.subr.bf16.mxu0 0
  %232 = vmatpush1.bf16.msra.mxu0 0
  %233 = vmatprep.subr.bf16.mxu0 0
  %234 = vmatpush1.bf16.msra.mxu0 0
  %235 = vmatprep.subr.bf16.mxu0 0
  %236 = vmatpush1.bf16.msra.mxu0 0
  %237 = vmatprep.subr.bf16.mxu0 0
  %238 = vmatpush1.bf16.msra.mxu0 0
  %239 = vmatprep.subr.bf16.mxu0 0
  %240 = vmatpush1.bf16.msra.mxu0 0
  %241 = vmatprep.subr.bf16.mxu0 0
  %242 = vmatpush1.bf16.msra.mxu0 0
  %243 = vmatprep.subr.bf16.mxu0 0
  %244 = vmatpush1.bf16.msra.mxu0 0
  %245 = vmatprep.subr.bf16.mxu0 0
  %246 = vmatpush1.bf16.msra.mxu0 0
  %247 = vmatprep.subr.bf16.mxu0 0
  %248 = vmatpush1.bf16.msra.mxu0 0
  %249 = vmatprep.subr.bf16.mxu0 0
  %250 = vmatpush1.bf16.msra.mxu0 0
  %251 = vmatprep.subr.bf16.mxu0 0
  %252 = vmatpush1.bf16.msra.mxu0 0
  %253 = vmatprep.subr.bf16.mxu0 0
  %254 = vmatpush1.bf16.msra.mxu0 0
  %255 = vmatprep.subr.bf16.mxu0 0
  %256 = vmatpush1.bf16.msra.mxu0 0
  %257 = vmatprep.mubr.bf16.mxu0 0
  %258 = vmatmul.mubr.bf16.gmra.mrb[0].mxu0 %v183
  %v259 = vpop.f32.mrb[0].mxu0
  %v260 = vadd.f32 %v220, %v259
  %v261 = vpop.f32.mrb[0].mxu0
  %v262 = vpop.f32.mrb[0].mxu0
  %v263 = vpop.f32.mrb[0].mxu0
  %264 = vdwg.mxu0
  %v265 = vmul.f32 %v260, 0.2
  %v266 = vmax.f32 %v260, %v265
  %v267 = vld [vmem:[%s3] sm:$0x3]
  %vm268 = vcmask 523264
  %v269 = vsel %vm268, %v266, 0.0
  %v270 = vrot.slane %v269, 4
  %v271 = vadd.f32 %v269, %v270
  %v272 = vrot.slane %v271, 2
  %v273 = vadd.f32 %v271, %v272
  %v274 = vrot.slane %v273, 1
  %v275 = vadd.f32 %v273, %v274
  %v276 = vrcp.pop 8.0
  %v277 = vmul.f32 %v275, %v276
  %v278 = vsub.f32 %v266, %v277
  %v279 = vmul.f32 %v278, %v278
  %v280 = vsel %vm268, %v279, 0.0
  %v281 = vrot.slane %v280, 4
  %v282 = vadd.f32 %v280, %v281
  %v283 = vrot.slane %v282, 2
  %v284 = vadd.f32 %v282, %v283
  %v285 = vrot.slane %v284, 1
  %v286 = vadd.f32 %v284, %v285
  %v287 = vmul.f32 %v286, %v276
  %v288 = vadd.f32 %v287, 0.8
  %v289 = vrsqrt.pop %v288
  %v290 = vmul.f32 %v278, %v289
  %v291 = vlaneseq
  %v292 = vshrl.u32 %v291, 7
  %v293 = vsub.s32 0, %v292
  %v294 = vrot.slane %v267, %v293
  %v295 = vmul.f32 %v290, %v294
  %v296 = vlaneseq
  %v297 = vshrl.u32 %v296, 7
  %v298 = vsub.s32 1, %v297
  %v299 = vrot.slane %v267, %v298
  %v300 = vadd.f32 %v295, %v299
  %v301 = vpack.c.bf16 %v300, %v300
  %vm302 = vcmask 519168
  %303 = vst.msk [vmem:[%s4] sm:$0xf] %vm302, %v301
  // Predicated region
  $region18: #{discriminator_forward.6} parent=0 // pred_check
    _
  $region19: #{discriminator_forward.6} parent=0 // pred_check_branch
    %305 = sbr.rel (0) target = $region21
  $region20: #{discriminator_forward.6} parent=0 // pred_region
    _
  $region21: #{discriminator_forward.6} parent=0 // pred_fallthru
    _
  // Predicated region
  $region22: #{discriminator_forward.6} parent=0 // pred_check
    _
  $region23: #{discriminator_forward.6} parent=0 // pred_check_branch
    %307 = sbr.rel (0) target = $region25
  $region24: #{discriminator_forward.6} parent=0 // pred_region
    _
  $region25: #{discriminator_forward.6} parent=0 // pred_fallthru
    _

// kernel: discriminator_forward.7
$region0: #{discriminator_forward.7}
  #allocation0 [shape = 'u32[]', space=smem, size = 0x4, offset = 0x4, fixed_abs, tag = 'smem constant byte address 0x4 - core index']
  #allocation1 [shape = 'u32[144,128]{1,0:T(1,128)}', space=vmem, size = 0x12000, scoped, tag = 'internal scratch']
  #allocation2 [shape = 'f32[1,1]{1,0:T(1,128)S(1)}', space=vmem, size = 0x200, scoped, tag = 'scoped memory for discriminator_forward.7']
  %s0 = inlined_call_operand.vmem [shape: bf16[2,576], index: 0, kind: input, shape index: {}]
  %s1 = inlined_call_operand.vmem [shape: bf16[576,128], index: 1, kind: input, shape index: {}]
  %s2 = inlined_call_operand.vmem [shape: f32[1,128], index: 2, kind: input, shape index: {}]
  %s3 = inlined_call_operand.vmem [shape: f32[2,128], index: 3, kind: input, shape index: {}]
  %s4 = inlined_call_operand.vmem [shape: f32[1,128], index: 4, kind: input, shape index: {}]
  %s5 = inlined_call_operand.<no memory space> [shape: f32[1,1], index: 5, kind: input, shape index: {}]
  %s6 = inlined_call_operand.vmem [shape: f32[2,1], index: 6, kind: output, shape index: {}]
  %s7 = sld [smem:[#allocation0]]
  $region34: #{discriminator_forward.7} parent=0
    _
  %s9 = ssub.s32 1, %s7
  %s10 = scalar_select 0, %s9, %s7
  %v11 = vstv %s5
  %12 = vst [vmem:[#allocation2] sm:$0x1] %v11
  // Predicated region
  $region2: #{discriminator_forward.7} parent=0 // pred_check
    _
  $region3: #{discriminator_forward.7} parent=0 // pred_check_branch
    %14 = sbr.rel (0) target = $region5
  $region4: #{discriminator_forward.7} parent=0 // pred_region
    _
  $region5: #{discriminator_forward.7} parent=0 // pred_fallthru
    _
  // Predicated region
  $region6: #{discriminator_forward.7} parent=0 // pred_check
    _
  $region7: #{discriminator_forward.7} parent=0 // pred_check_branch
    %16 = sbr.rel (0) target = $region9
  $region8: #{discriminator_forward.7} parent=0 // pred_region
    _
  $region9: #{discriminator_forward.7} parent=0 // pred_fallthru
    _
  // Predicated region
  $region10: #{discriminator_forward.7} parent=0 // pred_check
    _
  $region11: #{discriminator_forward.7} parent=0 // pred_check_branch
    %18 = sbr.rel (0) target = $region13
  $region12: #{discriminator_forward.7} parent=0 // pred_region
    _
  $region13: #{discriminator_forward.7} parent=0 // pred_fallthru
    _
  // Predicated region
  $region14: #{discriminator_forward.7} parent=0 // pred_check
    _
  $region15: #{discriminator_forward.7} parent=0 // pred_check_branch
    %20 = sbr.rel (0) target = $region17
  $region16: #{discriminator_forward.7} parent=0 // pred_region
    _
  $region17: #{discriminator_forward.7} parent=0 // pred_fallthru
    _
  // Predicated region
  $region18: #{discriminator_forward.7} parent=0 // pred_check
    _
  $region19: #{discriminator_forward.7} parent=0 // pred_check_branch
    %22 = sbr.rel (0) target = $region21
  $region20: #{discriminator_forward.7} parent=0 // pred_region
    _
  $region21: #{discriminator_forward.7} parent=0 // pred_fallthru
    _
  // Predicated region
  $region22: #{discriminator_forward.7} parent=0 // pred_check
    _
  $region23: #{discriminator_forward.7} parent=0 // pred_check_branch
    %24 = sbr.rel (0) target = $region25
  $region24: #{discriminator_forward.7} parent=0 // pred_region
    _
  $region25: #{discriminator_forward.7} parent=0 // pred_fallthru
    _
  %v26 = vld [vmem:[%s0] sm:$0x1f]
  %v27 = vld [vmem:[%s1] sm:$0xf]
  %v28 = vld [vmem:[%s1 + $0x4] sm:$0xf]
  %v29 = vld [vmem:[%s1 + $0x8] sm:$0xf]
  %v30 = vld [vmem:[%s1 + $0xc] sm:$0xf]
  %v31 = vld [vmem:[%s1 + $0x10] sm:$0xf]
  %v32 = vld [vmem:[%s1 + $0x14] sm:$0xf]
  %v33 = vld [vmem:[%s1 + $0x18] sm:$0xf]
  %v34 = vld [vmem:[%s1 + $0x1c] sm:$0xf]
  %v35 = vld [vmem:[%s1 + $0x20] sm:$0xf]
  %v36 = vld [vmem:[%s1 + $0x24] sm:$0xf]
  %v37 = vld [vmem:[%s1 + $0x28] sm:$0xf]
  %v38 = vld [vmem:[%s1 + $0x2c] sm:$0xf]
  %v39 = vld [vmem:[%s1 + $0x30] sm:$0xf]
  %v40 = vld [vmem:[%s1 + $0x34] sm:$0xf]
  %v41 = vld [vmem:[%s1 + $0x38] sm:$0xf]
  %v42 = vld [vmem:[%s1 + $0x3c] sm:$0xf]
  %v43 = vld [vmem:[%s1 + $0x40] sm:$0xf]
  %v44 = vld [vmem:[%s1 + $0x44] sm:$0xf]
  %v45 = vld [vmem:[%s1 + $0x48] sm:$0xf]
  %v46 = vld [vmem:[%s1 + $0x4c] sm:$0xf]
  %v47 = vld [vmem:[%s1 + $0x50] sm:$0xf]
  %v48 = vld [vmem:[%s1 + $0x54] sm:$0xf]
  %v49 = vld [vmem:[%s1 + $0x58] sm:$0xf]
  %v50 = vld [vmem:[%s1 + $0x5c] sm:$0xf]
  %v51 = vld [vmem:[%s1 + $0x60] sm:$0xf]
  %v52 = vld [vmem:[%s1 + $0x64] sm:$0xf]
  %v53 = vld [vmem:[%s1 + $0x68] sm:$0xf]
  %v54 = vld [vmem:[%s1 + $0x6c] sm:$0xf]
  %v55 = vld [vmem:[%s1 + $0x70] sm:$0xf]
  %v56 = vld [vmem:[%s1 + $0x74] sm:$0xf]
  %v57 = vld [vmem:[%s1 + $0x78] sm:$0xf]
  %v58 = vld [vmem:[%s1 + $0x7c] sm:$0xf]
  %v59 = vld [vmem:[%s1 + $0x80] sm:$0xf]
  %v60 = vld [vmem:[%s1 + $0x84] sm:$0xf]
  %v61 = vld [vmem:[%s1 + $0x88] sm:$0xf]
  %v62 = vld [vmem:[%s1 + $0x8c] sm:$0xf]
  %v63 = vld [vmem:[%s1 + $0x90] sm:$0xf]
  %v64 = vld [vmem:[%s1 + $0x94] sm:$0xf]
  %v65 = vld [vmem:[%s1 + $0x98] sm:$0xf]
  %v66 = vld [vmem:[%s1 + $0x9c] sm:$0xf]
  %v67 = vld [vmem:[%s1 + $0xa0] sm:$0xf]
  %v68 = vld [vmem:[%s1 + $0xa4] sm:$0xf]
  %v69 = vld [vmem:[%s1 + $0xa8] sm:$0xf]
  %v70 = vld [vmem:[%s1 + $0xac] sm:$0xf]
  %v71 = vld [vmem:[%s1 + $0xb0] sm:$0xf]
  %v72 = vld [vmem:[%s1 + $0xb4] sm:$0xf]
  %v73 = vld [vmem:[%s1 + $0xb8] sm:$0xf]
  %v74 = vld [vmem:[%s1 + $0xbc] sm:$0xf]
  %v75 = vld [vmem:[%s1 + $0xc0] sm:$0xf]
  %v76 = vld [vmem:[%s1 + $0xc4] sm:$0xf]
  %v77 = vld [vmem:[%s1 + $0xc8] sm:$0xf]
  %v78 = vld [vmem:[%s1 + $0xcc] sm:$0xf]
  %v79 = vld [vmem:[%s1 + $0xd0] sm:$0xf]
  %v80 = vld [vmem:[%s1 + $0xd4] sm:$0xf]
  %v81 = vld [vmem:[%s1 + $0xd8] sm:$0xf]
  %v82 = vld [vmem:[%s1 + $0xdc] sm:$0xf]
  %v83 = vld [vmem:[%s1 + $0xe0] sm:$0xf]
  %v84 = vld [vmem:[%s1 + $0xe4] sm:$0xf]
  %v85 = vld [vmem:[%s1 + $0xe8] sm:$0xf]
  %v86 = vld [vmem:[%s1 + $0xec] sm:$0xf]
  %v87 = vld [vmem:[%s1 + $0xf0] sm:$0xf]
  %v88 = vld [vmem:[%s1 + $0xf4] sm:$0xf]
  %v89 = vld [vmem:[%s1 + $0xf8] sm:$0xf]
  %v90 = vld [vmem:[%s1 + $0xfc] sm:$0xf]
  %v91 = vld [vmem:[%s1 + $0x100] sm:$0xf]
  %v92 = vld [vmem:[%s1 + $0x104] sm:$0xf]
  %v93 = vld [vmem:[%s1 + $0x108] sm:$0xf]
  %v94 = vld [vmem:[%s1 + $0x10c] sm:$0xf]
  %v95 = vld [vmem:[%s1 + $0x110] sm:$0xf]
  %v96 = vld [vmem:[%s1 + $0x114] sm:$0xf]
  %v97 = vld [vmem:[%s1 + $0x118] sm:$0xf]
  %v98 = vld [vmem:[%s1 + $0x11c] sm:$0xf]
  %v99 = vld [vmem:[%s2] sm:$0x1]
  %v101 = vlaneseq
  %v102 = vshrl.u32 %v101, 7
  %v103 = vsub.s32 0, %v102
  %v104 = vrot.slane %v99, %v103
  %v107 = vcombine.high %v26, %v26
  %v109 = vunpack.c.l.s4 1966171168
  %v110 = vunpack.c.0.s8 %v109
  %v111 = vlaneseq
  %v112 = vshrl.u32 %v111, 7
  %v113 = vsub.s32 %v110, %v112
  %v114 = vrot.slane %v26, %v113
  %v116 = vunpack.c.l.s4 1966171168
  %v117 = vunpack.c.0.s8 %v116
  %v118 = vlaneseq
  %v119 = vshrl.u32 %v118, 7
  %v120 = vsub.s32 %v117, %v119
  %v121 = vrot.slane %v107, %v120
  %v122 = vcombine.high %v114, %v114
  %v124 = vunpack.c.l.s4 1966171168
  %v125 = vunpack.c.0.s8 %v124
  %v126 = vlaneseq
  %v127 = vshrl.u32 %v126, 7
  %v128 = vsub.s32 %v125, %v127
  %v129 = vrot.slane %v114, %v128
  %v131 = vunpack.c.l.s4 1966171168
  %v132 = vunpack.c.0.s8 %v131
  %v133 = vlaneseq
  %v134 = vshrl.u32 %v133, 7
  %v135 = vsub.s32 %v132, %v134
  %v136 = vrot.slane %v121, %v135
  %v138 = vunpack.c.l.s4 1966171168
  %v139 = vunpack.c.0.s8 %v138
  %v140 = vlaneseq
  %v141 = vshrl.u32 %v140, 7
  %v142 = vsub.s32 %v139, %v141
  %v143 = vrot.slane %v122, %v142
  %v144 = vcombine.high %v129, %v129
  %v145 = vcombine.high %v143, %v143
  %v222 = vunpack.c.l.b16 %v27
  %v223 = vunpack.c.l.b16 %v28
  %v224 = vunpack.c.l.b16 %v29
  %v225 = vunpack.c.l.b16 %v30
  %v226 = vunpack.c.l.b16 %v31
  %v227 = vunpack.c.l.b16 %v32
  %v228 = vunpack.c.l.b16 %v33
  %v229 = vunpack.c.l.b16 %v34
  %v230 = vunpack.c.l.b16 %v35
  %v231 = vunpack.c.l.b16 %v36
  %v232 = vunpack.c.l.b16 %v37
  %v233 = vunpack.c.l.b16 %v38
  %v234 = vunpack.c.l.b16 %v39
  %v235 = vunpack.c.l.b16 %v40
  %v236 = vunpack.c.l.b16 %v41
  %v237 = vunpack.c.l.b16 %v42
  %v238 = vunpack.c.l.b16 %v43
  %v239 = vunpack.c.l.b16 %v44
  %v240 = vunpack.c.l.b16 %v45
  %v241 = vunpack.c.l.b16 %v46
  %v242 = vunpack.c.l.b16 %v47
  %v243 = vunpack.c.l.b16 %v48
  %v244 = vunpack.c.l.b16 %v49
  %v245 = vunpack.c.l.b16 %v50
  %v246 = vunpack.c.l.b16 %v51
  %v247 = vunpack.c.l.b16 %v52
  %v248 = vunpack.c.l.b16 %v53
  %v249 = vunpack.c.l.b16 %v54
  %v250 = vunpack.c.l.b16 %v55
  %v251 = vunpack.c.l.b16 %v56
  %v252 = vunpack.c.l.b16 %v57
  %v253 = vunpack.c.l.b16 %v58
  %v254 = vunpack.c.l.b16 %v59
  %v255 = vunpack.c.l.b16 %v60
  %v256 = vunpack.c.l.b16 %v61
  %v257 = vunpack.c.l.b16 %v62
  %v258 = vunpack.c.l.b16 %v63
  %v259 = vunpack.c.l.b16 %v64
  %v260 = vunpack.c.l.b16 %v65
  %v261 = vunpack.c.l.b16 %v66
  %v262 = vunpack.c.l.b16 %v67
  %v263 = vunpack.c.l.b16 %v68
  %v264 = vunpack.c.l.b16 %v69
  %v265 = vunpack.c.l.b16 %v70
  %v266 = vunpack.c.l.b16 %v71
  %v267 = vunpack.c.l.b16 %v72
  %v268 = vunpack.c.l.b16 %v73
  %v269 = vunpack.c.l.b16 %v74
  %v270 = vunpack.c.l.b16 %v75
  %v271 = vunpack.c.l.b16 %v76
  %v272 = vunpack.c.l.b16 %v77
  %v273 = vunpack.c.l.b16 %v78
  %v274 = vunpack.c.l.b16 %v79
  %v275 = vunpack.c.l.b16 %v80
  %v276 = vunpack.c.l.b16 %v81
  %v277 = vunpack.c.l.b16 %v82
  %v278 = vunpack.c.l.b16 %v83
  %v279 = vunpack.c.l.b16 %v84
  %v280 = vunpack.c.l.b16 %v85
  %v281 = vunpack.c.l.b16 %v86
  %v282 = vunpack.c.l.b16 %v87
  %v283 = vunpack.c.l.b16 %v88
  %v284 = vunpack.c.l.b16 %v89
  %v285 = vunpack.c.l.b16 %v90
  %v286 = vunpack.c.l.b16 %v91
  %v287 = vunpack.c.l.b16 %v92
  %v288 = vunpack.c.l.b16 %v93
  %v289 = vunpack.c.l.b16 %v94
  %v290 = vunpack.c.l.b16 %v95
  %v291 = vunpack.c.l.b16 %v96
  %v292 = vunpack.c.l.b16 %v97
  %v293 = vunpack.c.l.b16 %v98
  %v294 = vpack.c.b16 %v223, %v222
  %v295 = vpack.c.b16 %v225, %v224
  %v296 = vpack.c.b16 %v227, %v226
  %v297 = vpack.c.b16 %v229, %v228
  %v298 = vpack.c.b16 %v231, %v230
  %v299 = vpack.c.b16 %v233, %v232
  %v300 = vpack.c.b16 %v235, %v234
  %v301 = vpack.c.b16 %v237, %v236
  %v302 = vpack.c.b16 %v239, %v238
  %v303 = vpack.c.b16 %v241, %v240
  %v304 = vpack.c.b16 %v243, %v242
  %v305 = vpack.c.b16 %v245, %v244
  %v306 = vpack.c.b16 %v247, %v246
  %v307 = vpack.c.b16 %v249, %v248
  %v308 = vpack.c.b16 %v251, %v250
  %v309 = vpack.c.b16 %v253, %v252
  %v310 = vpack.c.b16 %v255, %v254
  %v311 = vpack.c.b16 %v257, %v256
  %v312 = vpack.c.b16 %v259, %v258
  %v313 = vpack.c.b16 %v261, %v260
  %v314 = vpack.c.b16 %v263, %v262
  %v315 = vpack.c.b16 %v265, %v264
  %v316 = vpack.c.b16 %v267, %v266
  %v317 = vpack.c.b16 %v269, %v268
  %v318 = vpack.c.b16 %v271, %v270
  %v319 = vpack.c.b16 %v273, %v272
  %v320 = vpack.c.b16 %v275, %v274
  %v321 = vpack.c.b16 %v277, %v276
  %v322 = vpack.c.b16 %v279, %v278
  %v323 = vpack.c.b16 %v281, %v280
  %v324 = vpack.c.b16 %v283, %v282
  %v325 = vpack.c.b16 %v285, %v284
  %v326 = vpack.c.b16 %v287, %v286
  %v327 = vpack.c.b16 %v289, %v288
  %v328 = vpack.c.b16 %v291, %v290
  %v329 = vpack.c.b16 %v293, %v292
  %vm366 = vcmask 523264
  %v368 = vsel %vm366, %v136, 0
  %370 = vmatprep.subr.bf16.mxu0 0
  %371 = vmatpush1.bf16.msra.mxu0 %v294
  %372 = vmatprep.subr.bf16.mxu0 0
  %373 = vmatpush1.bf16.msra.mxu0 %v295
  %374 = vmatprep.subr.bf16.mxu0 0
  %375 = vmatpush1.bf16.msra.mxu0 %v296
  %376 = vmatprep.subr.bf16.mxu0 0
  %377 = vmatpush1.bf16.msra.mxu0 %v297
  %378 = vmatprep.subr.bf16.mxu0 0
  %379 = vmatpush1.bf16.msra.mxu0 %v298
  %380 = vmatprep.subr.bf16.mxu0 0
  %381 = vmatpush1.bf16.msra.mxu0 %v299
  %382 = vmatprep.subr.bf16.mxu0 0
  %383 = vmatpush1.bf16.msra.mxu0 %v300
  %384 = vmatprep.subr.bf16.mxu0 0
  %385 = vmatpush1.bf16.msra.mxu0 %v301
  %386 = vmatprep.subr.bf16.mxu0 0
  %387 = vmatpush1.bf16.msra.mxu0 %v302
  %388 = vmatprep.subr.bf16.mxu0 0
  %389 = vmatpush1.bf16.msra.mxu0 %v303
  %390 = vmatprep.subr.bf16.mxu0 0
  %391 = vmatpush1.bf16.msra.mxu0 %v304
  %392 = vmatprep.subr.bf16.mxu0 0
  %393 = vmatpush1.bf16.msra.mxu0 %v305
  %394 = vmatprep.subr.bf16.mxu0 0
  %395 = vmatpush1.bf16.msra.mxu0 %v306
  %396 = vmatprep.subr.bf16.mxu0 0
  %397 = vmatpush1.bf16.msra.mxu0 %v307
  %398 = vmatprep.subr.bf16.mxu0 0
  %399 = vmatpush1.bf16.msra.mxu0 %v308
  %400 = vmatprep.subr.bf16.mxu0 0
  %401 = vmatpush1.bf16.msra.mxu0 %v309
  %402 = vmatprep.mubr.bf16.mxu0 %v143
  %403 = vmatmul.mubr.bf16.gmra.mrb[0].mxu0 %v129
  %v404 = vpop.f32.mrb[0].mxu0
  %v405 = vadd.f32 %v104, %v404
  %v406 = vpop.f32.mrb[0].mxu0
  %v407 = vpop.f32.mrb[0].mxu0
  %v408 = vpop.f32.mrb[0].mxu0
  %409 = vdwg.mxu0
  %410 = vmatprep.subr.bf16.mxu0 0
  %411 = vmatpush1.bf16.msra.mxu0 %v310
  %412 = vmatprep.subr.bf16.mxu0 0
  %413 = vmatpush1.bf16.msra.mxu0 %v311
  %414 = vmatprep.subr.bf16.mxu0 0
  %415 = vmatpush1.bf16.msra.mxu0 %v312
  %416 = vmatprep.subr.bf16.mxu0 0
  %417 = vmatpush1.bf16.msra.mxu0 %v313
  %418 = vmatprep.subr.bf16.mxu0 0
  %419 = vmatpush1.bf16.msra.mxu0 %v314
  %420 = vmatprep.subr.bf16.mxu0 0
  %421 = vmatpush1.bf16.msra.mxu0 %v315
  %422 = vmatprep.subr.bf16.mxu0 0
  %423 = vmatpush1.bf16.msra.mxu0 %v316
  %424 = vmatprep.subr.bf16.mxu0 0
  %425 = vmatpush1.bf16.msra.mxu0 %v317
  %426 = vmatprep.subr.bf16.mxu0 0
  %427 = vmatpush1.bf16.msra.mxu0 %v318
  %428 = vmatprep.subr.bf16.mxu0 0
  %429 = vmatpush1.bf16.msra.mxu0 %v319
  %430 = vmatprep.subr.bf16.mxu0 0
  %431 = vmatpush1.bf16.msra.mxu0 %v320
  %432 = vmatprep.subr.bf16.mxu0 0
  %433 = vmatpush1.bf16.msra.mxu0 %v321
  %434 = vmatprep.subr.bf16.mxu0 0
  %435 = vmatpush1.bf16.msra.mxu0 %v322
  %436 = vmatprep.subr.bf16.mxu0 0
  %437 = vmatpush1.bf16.msra.mxu0 %v323
  %438 = vmatprep.subr.bf16.mxu0 0
  %439 = vmatpush1.bf16.msra.mxu0 %v324
  %440 = vmatprep.subr.bf16.mxu0 0
  %441 = vmatpush1.bf16.msra.mxu0 %v325
  %442 = vmatprep.mubr.bf16.mxu0 %v145
  %443 = vmatmul.mubr.bf16.gmra.mrb[0].mxu0 %v144
  %v444 = vpop.f32.mrb[0].mxu0
  %v445 = vadd.f32 %v405, %v444
  %v446 = vpop.f32.mrb[0].mxu0
  %v447 = vpop.f32.mrb[0].mxu0
  %v448 = vpop.f32.mrb[0].mxu0
  %449 = vdwg.mxu0
  %450 = vmatprep.subr.bf16.mxu0 0
  %451 = vmatpush1.bf16.msra.mxu0 %v326
  %452 = vmatprep.subr.bf16.mxu0 0
  %453 = vmatpush1.bf16.msra.mxu0 %v327
  %454 = vmatprep.subr.bf16.mxu0 0
  %455 = vmatpush1.bf16.msra.mxu0 %v328
  %456 = vmatprep.subr.bf16.mxu0 0
  %457 = vmatpush1.bf16.msra.mxu0 %v329
  %458 = vmatprep.subr.bf16.mxu0 0
  %459 = vmatpush1.bf16.msra.mxu0 0
  %460 = vmatprep.subr.bf16.mxu0 0
  %461 = vmatpush1.bf16.msra.mxu0 0
  %462 = vmatprep.subr.bf16.mxu0 0
  %463 = vmatpush1.bf16.msra.mxu0 0
  %464 = vmatprep.subr.bf16.mxu0 0
  %465 = vmatpush1.bf16.msra.mxu0 0
  %466 = vmatprep.subr.bf16.mxu0 0
  %467 = vmatpush1.bf16.msra.mxu0 0
  %468 = vmatprep.subr.bf16.mxu0 0
  %469 = vmatpush1.bf16.msra.mxu0 0
  %470 = vmatprep.subr.bf16.mxu0 0
  %471 = vmatpush1.bf16.msra.mxu0 0
  %472 = vmatprep.subr.bf16.mxu0 0
  %473 = vmatpush1.bf16.msra.mxu0 0
  %474 = vmatprep.subr.bf16.mxu0 0
  %475 = vmatpush1.bf16.msra.mxu0 0
  %476 = vmatprep.subr.bf16.mxu0 0
  %477 = vmatpush1.bf16.msra.mxu0 0
  %478 = vmatprep.subr.bf16.mxu0 0
  %479 = vmatpush1.bf16.msra.mxu0 0
  %480 = vmatprep.subr.bf16.mxu0 0
  %481 = vmatpush1.bf16.msra.mxu0 0
  %482 = vmatprep.mubr.bf16.mxu0 0
  %483 = vmatmul.mubr.bf16.gmra.mrb[0].mxu0 %v368
  %v484 = vpop.f32.mrb[0].mxu0
  %v485 = vadd.f32 %v445, %v484
  %v486 = vpop.f32.mrb[0].mxu0
  %v487 = vpop.f32.mrb[0].mxu0
  %v488 = vpop.f32.mrb[0].mxu0
  %489 = vdwg.mxu0
  %v490 = vmul.f32 %v485, 0.2
  %v491 = vmax.f32 %v485, %v490
  %v492 = vld [vmem:[%s3] sm:$0x3]
  %vm493 = vcmask 1041408
  %v494 = vsel %vm493, %v491, 0.0
  %v495 = vrot.slane %v494, 4
  %v496 = vadd.f32 %v494, %v495
  %v497 = vrot.slane %v496, 2
  %v498 = vadd.f32 %v496, %v497
  %v499 = vrot.slane %v498, 1
  %v500 = vadd.f32 %v498, %v499
  %v501 = vrcp.pop 2.0
  %v502 = vmul.f32 %v500, %v501
  %v503 = vsub.f32 %v491, %v502
  %v504 = vmul.f32 %v503, %v503
  %v505 = vsel %vm493, %v504, 0.0
  %v506 = vrot.slane %v505, 4
  %v507 = vadd.f32 %v505, %v506
  %v508 = vrot.slane %v507, 2
  %v509 = vadd.f32 %v507, %v508
  %v510 = vrot.slane %v509, 1
  %v511 = vadd.f32 %v509, %v510
  %v512 = vmul.f32 %v511, %v501
  %v513 = vadd.f32 %v512, 0.8
  %v514 = vrsqrt.pop %v513
  %v515 = vmul.f32 %v503, %v514
  %v516 = vlaneseq
  %v517 = vshrl.u32 %v516, 7
  %v518 = vsub.s32 0, %v517
  %v519 = vrot.slane %v492, %v518
  %v520 = vmul.f32 %v515, %v519
  %v521 = vlaneseq
  %v522 = vshrl.u32 %v521, 7
  %v523 = vsub.s32 1, %v522
  %v524 = vrot.slane %v492, %v523
  %v525 = vadd.f32 %v520, %v524
  %v526 = vld [vmem:[%s4] sm:$0x1]
  %v528 = vlaneseq
  %v529 = vshrl.u32 %v528, 7
  %v530 = vsub.s32 0, %v529
  %v531 = vrot.slane %v526, %v530
  %v533 = vmul.f32 %v525, %v531
  %v534 = vsel %vm493, %v533, 0.0
  %535 = vadd.xlane.f32.xlu0 %v534
  %v536 = vpop.xlane.xlu0 %535
  %v537 = vld [vmem:[#allocation2] sm:$0x1]
  %v539 = vlaneseq
  %v540 = vshrl.u32 %v539, 7
  %v541 = vsub.s32 0, %v540
  %v542 = vrot.slane %v537, %v541
  %v544 = vadd.f32 %v536, %v542
  %v545 = vxor.u32 %v544, 2147483648
  %v546 = vmul.f32 %v545, 1.442695
  %v547 = vpow.pop %v546
  %v548 = vadd.f32 %v547, 1.0
  %v549 = vrcp.pop %v548
  %v550 = vmul.f32 1.0, %v549
  %vm551 = vcmask 1024
  %552 = vst.msk [vmem:[%s6] sm:$0x3] %vm551, %v550
  // Predicated region
  $region26: #{discriminator_forward.7} parent=0 // pred_check
    _
  $region27: #{discriminator_forward.7} parent=0 // pred_check_branch
    %554 = sbr.rel (0) target = $region29
  $region28: #{discriminator_forward.7} parent=0 // pred_region
    _
  $region29: #{discriminator_forward.7} parent=0 // pred_fallthru
    _
  // Predicated region
  $region30: #{discriminator_forward.7} parent=0 // pred_check
    _
  $region31: #{discriminator_forward.7} parent=0 // pred_check_branch
    %556 = sbr.rel (0) target = $region33
  $region32: #{discriminator_forward.7} parent=0 // pred_region
    _
  $region33: #{discriminator_forward.7} parent=0 // pred_fallthru
    _

</llo_original>
